<compile_context>
chip_gen: v6e
topology: v6e:2x2x1
jax: 0.10.0
libtpu: 0.0.40
codegen_flags: <defaults>
</compile_context>

<pallas_src>
import functools
import math

import jax
import jax.numpy as jnp
import numpy as np
from jax.experimental import pallas as pl
from jax.experimental.pallas import tpu as pltpu

# Model hyper-parameters (small, consistent with the module's constraints).
HIDDEN = 32                       # hidden_size
NUM_HEADS = 4                     # num_attention_heads
HEAD_DIM = HIDDEN // NUM_HEADS    # 8
INTERMEDIATE = 64                 # intermediate_size
LN_EPS = 1e-5


def _layernorm(x, gamma, eps=LN_EPS):
    """F.layer_norm over the last dim, weight-only (use_bias=False)."""
    mu = jnp.mean(x, axis=-1, keepdims=True)
    xc = x - mu
    var = jnp.mean(xc * xc, axis=-1, keepdims=True)
    return xc * jax.lax.rsqrt(var + eps) * gamma


def _gelu_exact(x):
    """Exact (erf) GELU matching torch.nn.functional.gelu.

    erf is evaluated with the Abramowitz-Stegun 7.1.26 rational approximation
    (|error| < 1.5e-7) so only exp/mul/add/select are needed in the kernel.
    """
    z = x * 0.7071067811865475            # x / sqrt(2)
    az = jnp.abs(z)
    t = 1.0 / (1.0 + 0.3275911 * az)
    poly = ((((1.061405429 * t - 1.453152027) * t + 1.421413741) * t
             - 0.284496736) * t + 0.254829592) * t
    erf_abs = 1.0 - poly * jnp.exp(-az * az)
    erf_z = jnp.where(z >= 0.0, erf_abs, -erf_abs)
    return 0.5 * x * (1.0 + erf_z)


def _transformer_layer_kernel(B, S,
                              x_ref, wqkv_ref, wo_attn_ref,
                              g_attn_ref, g_post_ref, g_premlp_ref,
                              wi_ref, g_mid_ref, wo_ffn_ref,
                              o_ref):
    H, NH, DH, I = HIDDEN, NUM_HEADS, HEAD_DIM, INTERMEDIATE
    BS = B * S

    x = x_ref[...]                                           # (B*S, H) f32

    # ------------------------- self-attention block -------------------------
    h = _layernorm(x, g_attn_ref[...])                       # pre-attn LN

    # Fused, pre-transposed QKV projection: one (B*S, H) @ (H, 3H) matmul.
    qkv = jnp.dot(h, wqkv_ref[...], preferred_element_type=jnp.float32)
    scale = 1.0 / math.sqrt(DH)
    q = qkv[:, 0 * H:1 * H] * scale                          # fold scale into q
    k = qkv[:, 1 * H:2 * H]
    v = qkv[:, 2 * H:3 * H]

    # Batch-parallel attention; heads remain a tiny static loop (DH = 8 pads to
    # one vreg either way, so B is the useful batching axis).
    q3 = q.reshape(B, S, H)
    k3 = k.reshape(B, S, H)
    v3 = v.reshape(B, S, H)
    ctx_heads = []
    for hd in range(NH):
        sl = slice(hd * DH, (hd + 1) * DH)
        qh, kh, vh = q3[:, :, sl], k3[:, :, sl], v3[:, :, sl]
        s = jnp.einsum('bqd,bkd->bqk', qh, kh,
                       preferred_element_type=jnp.float32)   # (B, S, S)
        s = s - jnp.max(s, axis=-1, keepdims=True)
        e = jnp.exp(s)
        inv = pl.reciprocal(jnp.sum(e, axis=-1, keepdims=True), approx=True)
        w = e * inv                                          # softmax (EUP rcp)
        ctx_heads.append(jnp.einsum('bqk,bkd->bqd', w, vh,
                                    preferred_element_type=jnp.float32))
    ctx = jnp.concatenate(ctx_heads, axis=-1).reshape(BS, H)

    attn_out = jnp.dot(ctx, wo_attn_ref[...], preferred_element_type=jnp.float32)
    attn_out = _layernorm(attn_out, g_post_ref[...])         # normformer post-LN
    x = x + attn_out                                         # residual

    # --------------------- feed-forward (GLU + normformer) ------------------
    h = _layernorm(x, g_premlp_ref[...])
    up = jnp.dot(h, wi_ref[...], preferred_element_type=jnp.float32)  # (B*S, 2I)
    mid = _gelu_exact(up[:, :I]) * up[:, I:]                 # GLU
    mid = _layernorm(mid, g_mid_ref[...])                    # normformer mid-LN
    ffn_out = jnp.dot(mid, wo_ffn_ref[...], preferred_element_type=jnp.float32)

    o_ref[...] = (x + ffn_out).astype(o_ref.dtype)           # residual + store


def transformer_layer_forward(x, params):
    """Pallas implementation of TransformerLayer.forward (default config)."""
    (wq, wk, wv, wo_attn, g_attn, g_post, g_premlp,
     wi0, wi1, g_mid, wo_ffn) = params
    B, S, H = x.shape
    assert H == HIDDEN
    BS = B * S
    I = INTERMEDIATE

    # Host-side weight prep: pre-transpose to (in, out) and fuse Q/K/V and the
    # two GLU up-projections so the kernel runs 4 dense matmuls total.
    wqkv_t = jnp.concatenate([wq.T, wk.T, wv.T], axis=1)     # (H, 3H)
    wo_attn_t = wo_attn.T                                    # (H, H)
    wi_t = jnp.concatenate([wi0.T, wi1.T], axis=1)           # (H, 2I) = (32, 128)
    wo_ffn_t = wo_ffn.T                                      # (I, H)
    g_attn2 = g_attn.reshape(1, H)
    g_post2 = g_post.reshape(1, H)
    g_premlp2 = g_premlp.reshape(1, H)
    g_mid2 = g_mid.reshape(1, I)

    x2d = x.reshape(BS, H)   # flatten batch*seq into the matmul M-dim

    flops = (2 * BS * H * 3 * H
             + 2 * B * NUM_HEADS * 2 * S * S * HEAD_DIM
             + 2 * BS * H * H
             + 2 * BS * H * 2 * I
             + 2 * BS * I * H)
    transcendentals = B * NUM_HEADS * S * S + BS * I + 5 * BS
    bytes_accessed = 4 * (x2d.size + wqkv_t.size + wo_attn_t.size + wi_t.size
                          + wo_ffn_t.size + 3 * H + I + BS * H)

    vmem_spec = pl.BlockSpec(memory_space=pltpu.MemorySpace.VMEM)
    out2d = pl.pallas_call(
        functools.partial(_transformer_layer_kernel, B, S),
        out_shape=jax.ShapeDtypeStruct((BS, H), x.dtype),
        in_specs=[vmem_spec] * 9,
        out_specs=vmem_spec,
        cost_estimate=pl.CostEstimate(flops=flops,
                                      transcendentals=transcendentals,
                                      bytes_accessed=bytes_accessed),
    )(x2d, wqkv_t, wo_attn_t, g_attn2, g_post2, g_premlp2, wi_t, g_mid2, wo_ffn_t)
    return out2d.reshape(B, S, H)


def transformer_layer_reference(x, params):
    """Pure-JAX reference mirroring the PyTorch forward."""
    (wq, wk, wv, wo_attn, g_attn, g_post, g_premlp,
     wi0, wi1, g_mid, wo_ffn) = params
    B, S, H = x.shape

    def ln(t, g):
        mu = t.mean(-1, keepdims=True)
        var = ((t - mu) ** 2).mean(-1, keepdims=True)
        return (t - mu) * jax.lax.rsqrt(var + LN_EPS) * g

    residual = x
    h = ln(x, g_attn)
    q = (h @ wq.T).reshape(B, S, NUM_HEADS, HEAD_DIM).transpose(0, 2, 1, 3)
    k = (h @ wk.T).reshape(B, S, NUM_HEADS, HEAD_DIM).transpose(0, 2, 1, 3)
    v = (h @ wv.T).reshape(B, S, NUM_HEADS, HEAD_DIM).transpose(0, 2, 1, 3)
    scores = jnp.einsum('bhqd,bhkd->bhqk', q, k) / jnp.sqrt(jnp.float32(HEAD_DIM))
    w = jax.nn.softmax(scores, axis=-1)
    ctx = jnp.einsum('bhqk,bhkd->bhqd', w, v).transpose(0, 2, 1, 3).reshape(B, S, H)
    attn = ln(ctx @ wo_attn.T, g_post)
    x = residual + attn

    residual = x
    h = ln(x, g_premlp)
    hg = jax.nn.gelu(h @ wi0.T, approximate=False)
    hl = h @ wi1.T
    mid = ln(hg * hl, g_mid)
    return residual + mid @ wo_ffn.T


if __name__ == "__main__":
    # TODO(synk): cross-attention (encoder_hidden_states / encoder_attention_mask)
    # and cond_embeds (AdaLN) branches are disabled by default and not implemented;
    # dropout is identity at p=0.0.
    B, S = 2, 8
    key = jax.random.PRNGKey(0)
    keys = jax.random.split(key, 12)
    bound_h = 1.0 / np.sqrt(HIDDEN)
    bound_i = 1.0 / np.sqrt(INTERMEDIATE)

    x = jax.random.normal(keys[0], (B, S, HIDDEN), dtype=jnp.float32)
    wq = jax.random.uniform(keys[1], (HIDDEN, HIDDEN), minval=-bound_h, maxval=bound_h, dtype=jnp.float32)
    wk = jax.random.uniform(keys[2], (HIDDEN, HIDDEN), minval=-bound_h, maxval=bound_h, dtype=jnp.float32)
    wv = jax.random.uniform(keys[3], (HIDDEN, HIDDEN), minval=-bound_h, maxval=bound_h, dtype=jnp.float32)
    wo_attn = jax.random.uniform(keys[4], (HIDDEN, HIDDEN), minval=-bound_h, maxval=bound_h, dtype=jnp.float32)
    wi0 = jax.random.uniform(keys[5], (INTERMEDIATE, HIDDEN), minval=-bound_h, maxval=bound_h, dtype=jnp.float32)
    wi1 = jax.random.uniform(keys[6], (INTERMEDIATE, HIDDEN), minval=-bound_h, maxval=bound_h, dtype=jnp.float32)
    wo_ffn = jax.random.uniform(keys[7], (HIDDEN, INTERMEDIATE), minval=-bound_i, maxval=bound_i, dtype=jnp.float32)
    g_attn = 1.0 + 0.1 * jax.random.normal(keys[8], (HIDDEN,), dtype=jnp.float32)
    g_post = 1.0 + 0.1 * jax.random.normal(keys[9], (HIDDEN,), dtype=jnp.float32)
    g_premlp = 1.0 + 0.1 * jax.random.normal(keys[10], (HIDDEN,), dtype=jnp.float32)
    g_mid = 1.0 + 0.1 * jax.random.normal(keys[11], (INTERMEDIATE,), dtype=jnp.float32)

    params = (wq, wk, wv, wo_attn, g_attn, g_post, g_premlp, wi0, wi1, g_mid, wo_ffn)

    out = transformer_layer_forward(x, params)
    out = jax.block_until_ready(out)

    ref = transformer_layer_reference(x, params)
    # Tolerance covers the approximate EUP reciprocal used for the softmax
    # denominator (pl.reciprocal(..., approx=True)) and the erf polynomial
    # (<1.5e-7); all other math is exact f32.
    np.testing.assert_allclose(np.asarray(out), np.asarray(ref), rtol=5e-3, atol=5e-3)

    print("KERNEL_OK")
</pallas_src>

<mosaic_0001>
module attributes {stable_mosaic.version = 11 : i64} {
  func.func @_transformer_layer_kernel(%arg0: memref<16x32xf32, #tpu.memory_space<vmem>>, %arg1: memref<32x96xf32, #tpu.memory_space<vmem>>, %arg2: memref<32x32xf32, #tpu.memory_space<vmem>>, %arg3: memref<1x32xf32, #tpu.memory_space<vmem>>, %arg4: memref<1x32xf32, #tpu.memory_space<vmem>>, %arg5: memref<1x32xf32, #tpu.memory_space<vmem>>, %arg6: memref<32x128xf32, #tpu.memory_space<vmem>>, %arg7: memref<1x64xf32, #tpu.memory_space<vmem>>, %arg8: memref<64x32xf32, #tpu.memory_space<vmem>>, %arg9: memref<16x32xf32, #tpu.memory_space<vmem>>) attributes {dimension_semantics = [], scalar_prefetch = 0 : i64, scratch_operands = 0 : i64, tpu.core_type = #tpu.core_type<tc>} {
    %c0 = arith.constant 0 : index
    %c0_0 = arith.constant 0 : index
    %0 = vector.load %arg0[%c0, %c0_0] : memref<16x32xf32, #tpu.memory_space<vmem>>, vector<16x32xf32>
    %c0_1 = arith.constant 0 : index
    %c0_2 = arith.constant 0 : index
    %1 = vector.load %arg3[%c0_1, %c0_2] : memref<1x32xf32, #tpu.memory_space<vmem>>, vector<1x32xf32>
    %cst = arith.constant dense<0.000000e+00> : vector<16xf32>
    %2 = vector.multi_reduction <add>, %0, %cst [1] : vector<16x32xf32> to vector<16xf32>
    %3 = vector.shape_cast %2 : vector<16xf32> to vector<16x1xf32>
    %cst_3 = arith.constant 3.200000e+01 : f32
    %4 = vector.broadcast %cst_3 : f32 to vector<16x1xf32>
    %5 = arith.divf %3, %4 : vector<16x1xf32>
    %6 = vector.broadcast %5 : vector<16x1xf32> to vector<16x32xf32>
    %7 = arith.subf %0, %6 : vector<16x32xf32>
    %8 = arith.mulf %7, %7 : vector<16x32xf32>
    %cst_4 = arith.constant dense<0.000000e+00> : vector<16xf32>
    %9 = vector.multi_reduction <add>, %8, %cst_4 [1] : vector<16x32xf32> to vector<16xf32>
    %10 = vector.shape_cast %9 : vector<16xf32> to vector<16x1xf32>
    %cst_5 = arith.constant 3.200000e+01 : f32
    %11 = vector.broadcast %cst_5 : f32 to vector<16x1xf32>
    %12 = arith.divf %10, %11 : vector<16x1xf32>
    %cst_6 = arith.constant 9.99999974E-6 : f32
    %13 = vector.broadcast %cst_6 : f32 to vector<16x1xf32>
    %14 = arith.addf %12, %13 : vector<16x1xf32>
    %15 = math.rsqrt %14 : vector<16x1xf32>
    %16 = vector.broadcast %15 : vector<16x1xf32> to vector<16x32xf32>
    %17 = arith.mulf %7, %16 : vector<16x32xf32>
    %18 = vector.broadcast %1 : vector<1x32xf32> to vector<16x32xf32>
    %19 = arith.mulf %17, %18 : vector<16x32xf32>
    %c0_7 = arith.constant 0 : index
    %c0_8 = arith.constant 0 : index
    %20 = vector.load %arg1[%c0_7, %c0_8] : memref<32x96xf32, #tpu.memory_space<vmem>>, vector<32x96xf32>
    %cst_9 = arith.constant dense<0.000000e+00> : vector<16x96xf32>
    %21 = tpu.matmul %19, %20, %cst_9 {dimension_numbers = #tpu.dot_dimension_numbers<[1], [0], [0], [1], [0, 0, 1, 1], [], []>} : vector<16x32xf32>, vector<32x96xf32>, vector<16x96xf32> -> vector<16x96xf32>
    %22 = vector.extract_strided_slice %21 {offsets = [0, 0], sizes = [16, 32], strides = [1, 1]} : vector<16x96xf32> to vector<16x32xf32>
    %cst_10 = arith.constant 0.353553385 : f32
    %23 = vector.broadcast %cst_10 : f32 to vector<16x32xf32>
    %24 = arith.mulf %22, %23 : vector<16x32xf32>
    %25 = vector.extract_strided_slice %21 {offsets = [0, 32], sizes = [16, 32], strides = [1, 1]} : vector<16x96xf32> to vector<16x32xf32>
    %26 = vector.extract_strided_slice %21 {offsets = [0, 64], sizes = [16, 32], strides = [1, 1]} : vector<16x96xf32> to vector<16x32xf32>
    %27 = vector.shape_cast %24 : vector<16x32xf32> to vector<2x8x32xf32>
    %28 = vector.shape_cast %25 : vector<16x32xf32> to vector<2x8x32xf32>
    %29 = vector.shape_cast %26 : vector<16x32xf32> to vector<2x8x32xf32>
    %30 = vector.extract_strided_slice %27 {offsets = [0, 0, 0], sizes = [2, 8, 8], strides = [1, 1, 1]} : vector<2x8x32xf32> to vector<2x8x8xf32>
    %31 = vector.extract_strided_slice %28 {offsets = [0, 0, 0], sizes = [2, 8, 8], strides = [1, 1, 1]} : vector<2x8x32xf32> to vector<2x8x8xf32>
    %32 = vector.extract_strided_slice %29 {offsets = [0, 0, 0], sizes = [2, 8, 8], strides = [1, 1, 1]} : vector<2x8x32xf32> to vector<2x8x8xf32>
    "tpu.trace_start"() <{level = 10 : i32, message = "bqd,bkd->bqk"}> : () -> ()
    %cst_11 = arith.constant dense<0.000000e+00> : vector<2x8x8xf32>
    %33 = tpu.matmul %30, %31, %cst_11 {dimension_numbers = #tpu.dot_dimension_numbers<[2], [2], [1], [1], [0, 0, 0, 1, 1, 1], [0], [0]>} : vector<2x8x8xf32>, vector<2x8x8xf32>, vector<2x8x8xf32> -> vector<2x8x8xf32>
    "tpu.trace_stop"() : () -> ()
    %cst_12 = arith.constant dense<0xFF800000> : vector<2x8xf32>
    %34 = vector.multi_reduction <maximumf>, %33, %cst_12 [2] : vector<2x8x8xf32> to vector<2x8xf32>
    %35 = vector.shape_cast %34 : vector<2x8xf32> to vector<2x8x1xf32>
    %36 = vector.broadcast %35 : vector<2x8x1xf32> to vector<2x8x8xf32>
    %37 = arith.subf %33, %36 : vector<2x8x8xf32>
    %38 = math.exp %37 : vector<2x8x8xf32>
    %cst_13 = arith.constant dense<0.000000e+00> : vector<2x8xf32>
    %39 = vector.multi_reduction <add>, %38, %cst_13 [2] : vector<2x8x8xf32> to vector<2x8xf32>
    %40 = vector.shape_cast %39 : vector<2x8xf32> to vector<2x8x1xf32>
    %41 = tpu.reciprocal %40 {approx = true} : vector<2x8x1xf32> -> vector<2x8x1xf32>
    %42 = vector.broadcast %41 : vector<2x8x1xf32> to vector<2x8x8xf32>
    %43 = arith.mulf %38, %42 : vector<2x8x8xf32>
    "tpu.trace_start"() <{level = 10 : i32, message = "bqk,bkd->bqd"}> : () -> ()
    %cst_14 = arith.constant dense<0.000000e+00> : vector<2x8x8xf32>
    %44 = tpu.matmul %43, %32, %cst_14 {dimension_numbers = #tpu.dot_dimension_numbers<[2], [1], [1], [2], [0, 0, 0, 1, 1, 2], [0], [0]>} : vector<2x8x8xf32>, vector<2x8x8xf32>, vector<2x8x8xf32> -> vector<2x8x8xf32>
    "tpu.trace_stop"() : () -> ()
    %45 = vector.extract_strided_slice %27 {offsets = [0, 0, 8], sizes = [2, 8, 8], strides = [1, 1, 1]} : vector<2x8x32xf32> to vector<2x8x8xf32>
    %46 = vector.extract_strided_slice %28 {offsets = [0, 0, 8], sizes = [2, 8, 8], strides = [1, 1, 1]} : vector<2x8x32xf32> to vector<2x8x8xf32>
    %47 = vector.extract_strided_slice %29 {offsets = [0, 0, 8], sizes = [2, 8, 8], strides = [1, 1, 1]} : vector<2x8x32xf32> to vector<2x8x8xf32>
    "tpu.trace_start"() <{level = 10 : i32, message = "bqd,bkd->bqk"}> : () -> ()
    %cst_15 = arith.constant dense<0.000000e+00> : vector<2x8x8xf32>
    %48 = tpu.matmul %45, %46, %cst_15 {dimension_numbers = #tpu.dot_dimension_numbers<[2], [2], [1], [1], [0, 0, 0, 1, 1, 1], [0], [0]>} : vector<2x8x8xf32>, vector<2x8x8xf32>, vector<2x8x8xf32> -> vector<2x8x8xf32>
    "tpu.trace_stop"() : () -> ()
    %cst_16 = arith.constant dense<0xFF800000> : vector<2x8xf32>
    %49 = vector.multi_reduction <maximumf>, %48, %cst_16 [2] : vector<2x8x8xf32> to vector<2x8xf32>
    %50 = vector.shape_cast %49 : vector<2x8xf32> to vector<2x8x1xf32>
    %51 = vector.broadcast %50 : vector<2x8x1xf32> to vector<2x8x8xf32>
    %52 = arith.subf %48, %51 : vector<2x8x8xf32>
    %53 = math.exp %52 : vector<2x8x8xf32>
    %cst_17 = arith.constant dense<0.000000e+00> : vector<2x8xf32>
    %54 = vector.multi_reduction <add>, %53, %cst_17 [2] : vector<2x8x8xf32> to vector<2x8xf32>
    %55 = vector.shape_cast %54 : vector<2x8xf32> to vector<2x8x1xf32>
    %56 = tpu.reciprocal %55 {approx = true} : vector<2x8x1xf32> -> vector<2x8x1xf32>
    %57 = vector.broadcast %56 : vector<2x8x1xf32> to vector<2x8x8xf32>
    %58 = arith.mulf %53, %57 : vector<2x8x8xf32>
    "tpu.trace_start"() <{level = 10 : i32, message = "bqk,bkd->bqd"}> : () -> ()
    %cst_18 = arith.constant dense<0.000000e+00> : vector<2x8x8xf32>
    %59 = tpu.matmul %58, %47, %cst_18 {dimension_numbers = #tpu.dot_dimension_numbers<[2], [1], [1], [2], [0, 0, 0, 1, 1, 2], [0], [0]>} : vector<2x8x8xf32>, vector<2x8x8xf32>, vector<2x8x8xf32> -> vector<2x8x8xf32>
    "tpu.trace_stop"() : () -> ()
    %60 = vector.extract_strided_slice %27 {offsets = [0, 0, 16], sizes = [2, 8, 8], strides = [1, 1, 1]} : vector<2x8x32xf32> to vector<2x8x8xf32>
    %61 = vector.extract_strided_slice %28 {offsets = [0, 0, 16], sizes = [2, 8, 8], strides = [1, 1, 1]} : vector<2x8x32xf32> to vector<2x8x8xf32>
    %62 = vector.extract_strided_slice %29 {offsets = [0, 0, 16], sizes = [2, 8, 8], strides = [1, 1, 1]} : vector<2x8x32xf32> to vector<2x8x8xf32>
    "tpu.trace_start"() <{level = 10 : i32, message = "bqd,bkd->bqk"}> : () -> ()
    %cst_19 = arith.constant dense<0.000000e+00> : vector<2x8x8xf32>
    %63 = tpu.matmul %60, %61, %cst_19 {dimension_numbers = #tpu.dot_dimension_numbers<[2], [2], [1], [1], [0, 0, 0, 1, 1, 1], [0], [0]>} : vector<2x8x8xf32>, vector<2x8x8xf32>, vector<2x8x8xf32> -> vector<2x8x8xf32>
    "tpu.trace_stop"() : () -> ()
    %cst_20 = arith.constant dense<0xFF800000> : vector<2x8xf32>
    %64 = vector.multi_reduction <maximumf>, %63, %cst_20 [2] : vector<2x8x8xf32> to vector<2x8xf32>
    %65 = vector.shape_cast %64 : vector<2x8xf32> to vector<2x8x1xf32>
    %66 = vector.broadcast %65 : vector<2x8x1xf32> to vector<2x8x8xf32>
    %67 = arith.subf %63, %66 : vector<2x8x8xf32>
    %68 = math.exp %67 : vector<2x8x8xf32>
    %cst_21 = arith.constant dense<0.000000e+00> : vector<2x8xf32>
    %69 = vector.multi_reduction <add>, %68, %cst_21 [2] : vector<2x8x8xf32> to vector<2x8xf32>
    %70 = vector.shape_cast %69 : vector<2x8xf32> to vector<2x8x1xf32>
    %71 = tpu.reciprocal %70 {approx = true} : vector<2x8x1xf32> -> vector<2x8x1xf32>
    %72 = vector.broadcast %71 : vector<2x8x1xf32> to vector<2x8x8xf32>
    %73 = arith.mulf %68, %72 : vector<2x8x8xf32>
    "tpu.trace_start"() <{level = 10 : i32, message = "bqk,bkd->bqd"}> : () -> ()
    %cst_22 = arith.constant dense<0.000000e+00> : vector<2x8x8xf32>
    %74 = tpu.matmul %73, %62, %cst_22 {dimension_numbers = #tpu.dot_dimension_numbers<[2], [1], [1], [2], [0, 0, 0, 1, 1, 2], [0], [0]>} : vector<2x8x8xf32>, vector<2x8x8xf32>, vector<2x8x8xf32> -> vector<2x8x8xf32>
    "tpu.trace_stop"() : () -> ()
    %75 = vector.extract_strided_slice %27 {offsets = [0, 0, 24], sizes = [2, 8, 8], strides = [1, 1, 1]} : vector<2x8x32xf32> to vector<2x8x8xf32>
    %76 = vector.extract_strided_slice %28 {offsets = [0, 0, 24], sizes = [2, 8, 8], strides = [1, 1, 1]} : vector<2x8x32xf32> to vector<2x8x8xf32>
    %77 = vector.extract_strided_slice %29 {offsets = [0, 0, 24], sizes = [2, 8, 8], strides = [1, 1, 1]} : vector<2x8x32xf32> to vector<2x8x8xf32>
    "tpu.trace_start"() <{level = 10 : i32, message = "bqd,bkd->bqk"}> : () -> ()
    %cst_23 = arith.constant dense<0.000000e+00> : vector<2x8x8xf32>
    %78 = tpu.matmul %75, %76, %cst_23 {dimension_numbers = #tpu.dot_dimension_numbers<[2], [2], [1], [1], [0, 0, 0, 1, 1, 1], [0], [0]>} : vector<2x8x8xf32>, vector<2x8x8xf32>, vector<2x8x8xf32> -> vector<2x8x8xf32>
    "tpu.trace_stop"() : () -> ()
    %cst_24 = arith.constant dense<0xFF800000> : vector<2x8xf32>
    %79 = vector.multi_reduction <maximumf>, %78, %cst_24 [2] : vector<2x8x8xf32> to vector<2x8xf32>
    %80 = vector.shape_cast %79 : vector<2x8xf32> to vector<2x8x1xf32>
    %81 = vector.broadcast %80 : vector<2x8x1xf32> to vector<2x8x8xf32>
    %82 = arith.subf %78, %81 : vector<2x8x8xf32>
    %83 = math.exp %82 : vector<2x8x8xf32>
    %cst_25 = arith.constant dense<0.000000e+00> : vector<2x8xf32>
    %84 = vector.multi_reduction <add>, %83, %cst_25 [2] : vector<2x8x8xf32> to vector<2x8xf32>
    %85 = vector.shape_cast %84 : vector<2x8xf32> to vector<2x8x1xf32>
    %86 = tpu.reciprocal %85 {approx = true} : vector<2x8x1xf32> -> vector<2x8x1xf32>
    %87 = vector.broadcast %86 : vector<2x8x1xf32> to vector<2x8x8xf32>
    %88 = arith.mulf %83, %87 : vector<2x8x8xf32>
    "tpu.trace_start"() <{level = 10 : i32, message = "bqk,bkd->bqd"}> : () -> ()
    %cst_26 = arith.constant dense<0.000000e+00> : vector<2x8x8xf32>
    %89 = tpu.matmul %88, %77, %cst_26 {dimension_numbers = #tpu.dot_dimension_numbers<[2], [1], [1], [2], [0, 0, 0, 1, 1, 2], [0], [0]>} : vector<2x8x8xf32>, vector<2x8x8xf32>, vector<2x8x8xf32> -> vector<2x8x8xf32>
    "tpu.trace_stop"() : () -> ()
    %90 = tpu.concatenate %44, %59, %74, %89 in 2 : vector<2x8x8xf32>, vector<2x8x8xf32>, vector<2x8x8xf32>, vector<2x8x8xf32> -> vector<2x8x32xf32>
    %91 = vector.shape_cast %90 : vector<2x8x32xf32> to vector<16x32xf32>
    %c0_27 = arith.constant 0 : index
    %c0_28 = arith.constant 0 : index
    %92 = vector.load %arg2[%c0_27, %c0_28] : memref<32x32xf32, #tpu.memory_space<vmem>>, vector<32x32xf32>
    %cst_29 = arith.constant dense<0.000000e+00> : vector<16x32xf32>
    %93 = tpu.matmul %91, %92, %cst_29 {dimension_numbers = #tpu.dot_dimension_numbers<[1], [0], [0], [1], [0, 0, 1, 1], [], []>} : vector<16x32xf32>, vector<32x32xf32>, vector<16x32xf32> -> vector<16x32xf32>
    %c0_30 = arith.constant 0 : index
    %c0_31 = arith.constant 0 : index
    %94 = vector.load %arg4[%c0_30, %c0_31] : memref<1x32xf32, #tpu.memory_space<vmem>>, vector<1x32xf32>
    %cst_32 = arith.constant dense<0.000000e+00> : vector<16xf32>
    %95 = vector.multi_reduction <add>, %93, %cst_32 [1] : vector<16x32xf32> to vector<16xf32>
    %96 = vector.shape_cast %95 : vector<16xf32> to vector<16x1xf32>
    %cst_33 = arith.constant 3.200000e+01 : f32
    %97 = vector.broadcast %cst_33 : f32 to vector<16x1xf32>
    %98 = arith.divf %96, %97 : vector<16x1xf32>
    %99 = vector.broadcast %98 : vector<16x1xf32> to vector<16x32xf32>
    %100 = arith.subf %93, %99 : vector<16x32xf32>
    %101 = arith.mulf %100, %100 : vector<16x32xf32>
    %cst_34 = arith.constant dense<0.000000e+00> : vector<16xf32>
    %102 = vector.multi_reduction <add>, %101, %cst_34 [1] : vector<16x32xf32> to vector<16xf32>
    %103 = vector.shape_cast %102 : vector<16xf32> to vector<16x1xf32>
    %cst_35 = arith.constant 3.200000e+01 : f32
    %104 = vector.broadcast %cst_35 : f32 to vector<16x1xf32>
    %105 = arith.divf %103, %104 : vector<16x1xf32>
    %cst_36 = arith.constant 9.99999974E-6 : f32
    %106 = vector.broadcast %cst_36 : f32 to vector<16x1xf32>
    %107 = arith.addf %105, %106 : vector<16x1xf32>
    %108 = math.rsqrt %107 : vector<16x1xf32>
    %109 = vector.broadcast %108 : vector<16x1xf32> to vector<16x32xf32>
    %110 = arith.mulf %100, %109 : vector<16x32xf32>
    %111 = vector.broadcast %94 : vector<1x32xf32> to vector<16x32xf32>
    %112 = arith.mulf %110, %111 : vector<16x32xf32>
    %113 = arith.addf %0, %112 : vector<16x32xf32>
    %c0_37 = arith.constant 0 : index
    %c0_38 = arith.constant 0 : index
    %114 = vector.load %arg5[%c0_37, %c0_38] : memref<1x32xf32, #tpu.memory_space<vmem>>, vector<1x32xf32>
    %cst_39 = arith.constant dense<0.000000e+00> : vector<16xf32>
    %115 = vector.multi_reduction <add>, %113, %cst_39 [1] : vector<16x32xf32> to vector<16xf32>
    %116 = vector.shape_cast %115 : vector<16xf32> to vector<16x1xf32>
    %cst_40 = arith.constant 3.200000e+01 : f32
    %117 = vector.broadcast %cst_40 : f32 to vector<16x1xf32>
    %118 = arith.divf %116, %117 : vector<16x1xf32>
    %119 = vector.broadcast %118 : vector<16x1xf32> to vector<16x32xf32>
    %120 = arith.subf %113, %119 : vector<16x32xf32>
    %121 = arith.mulf %120, %120 : vector<16x32xf32>
    %cst_41 = arith.constant dense<0.000000e+00> : vector<16xf32>
    %122 = vector.multi_reduction <add>, %121, %cst_41 [1] : vector<16x32xf32> to vector<16xf32>
    %123 = vector.shape_cast %122 : vector<16xf32> to vector<16x1xf32>
    %cst_42 = arith.constant 3.200000e+01 : f32
    %124 = vector.broadcast %cst_42 : f32 to vector<16x1xf32>
    %125 = arith.divf %123, %124 : vector<16x1xf32>
    %cst_43 = arith.constant 9.99999974E-6 : f32
    %126 = vector.broadcast %cst_43 : f32 to vector<16x1xf32>
    %127 = arith.addf %125, %126 : vector<16x1xf32>
    %128 = math.rsqrt %127 : vector<16x1xf32>
    %129 = vector.broadcast %128 : vector<16x1xf32> to vector<16x32xf32>
    %130 = arith.mulf %120, %129 : vector<16x32xf32>
    %131 = vector.broadcast %114 : vector<1x32xf32> to vector<16x32xf32>
    %132 = arith.mulf %130, %131 : vector<16x32xf32>
    %c0_44 = arith.constant 0 : index
    %c0_45 = arith.constant 0 : index
    %133 = vector.load %arg6[%c0_44, %c0_45] : memref<32x128xf32, #tpu.memory_space<vmem>>, vector<32x128xf32>
    %cst_46 = arith.constant dense<0.000000e+00> : vector<16x128xf32>
    %134 = tpu.matmul %132, %133, %cst_46 {dimension_numbers = #tpu.dot_dimension_numbers<[1], [0], [0], [1], [0, 0, 1, 1], [], []>} : vector<16x32xf32>, vector<32x128xf32>, vector<16x128xf32> -> vector<16x128xf32>
    %135 = vector.extract_strided_slice %134 {offsets = [0, 0], sizes = [16, 64], strides = [1, 1]} : vector<16x128xf32> to vector<16x64xf32>
    %cst_47 = arith.constant 0.707106769 : f32
    %136 = vector.broadcast %cst_47 : f32 to vector<16x64xf32>
    %137 = arith.mulf %135, %136 : vector<16x64xf32>
    %138 = math.absf %137 : vector<16x64xf32>
    %cst_48 = arith.constant 0.327591091 : f32
    %139 = vector.broadcast %cst_48 : f32 to vector<16x64xf32>
    %140 = arith.mulf %139, %138 : vector<16x64xf32>
    %cst_49 = arith.constant 1.000000e+00 : f32
    %141 = vector.broadcast %cst_49 : f32 to vector<16x64xf32>
    %142 = arith.addf %141, %140 : vector<16x64xf32>
    %cst_50 = arith.constant 1.000000e+00 : f32
    %143 = vector.broadcast %cst_50 : f32 to vector<16x64xf32>
    %144 = arith.divf %143, %142 : vector<16x64xf32>
    %cst_51 = arith.constant 1.06140542 : f32
    %145 = vector.broadcast %cst_51 : f32 to vector<16x64xf32>
    %146 = arith.mulf %145, %144 : vector<16x64xf32>
    %cst_52 = arith.constant 1.45315206 : f32
    %147 = vector.broadcast %cst_52 : f32 to vector<16x64xf32>
    %148 = arith.subf %146, %147 : vector<16x64xf32>
    %149 = arith.mulf %148, %144 : vector<16x64xf32>
    %cst_53 = arith.constant 1.42141378 : f32
    %150 = vector.broadcast %cst_53 : f32 to vector<16x64xf32>
    %151 = arith.addf %149, %150 : vector<16x64xf32>
    %152 = arith.mulf %151, %144 : vector<16x64xf32>
    %cst_54 = arith.constant 0.284496725 : f32
    %153 = vector.broadcast %cst_54 : f32 to vector<16x64xf32>
    %154 = arith.subf %152, %153 : vector<16x64xf32>
    %155 = arith.mulf %154, %144 : vector<16x64xf32>
    %cst_55 = arith.constant 0.254829586 : f32
    %156 = vector.broadcast %cst_55 : f32 to vector<16x64xf32>
    %157 = arith.addf %155, %156 : vector<16x64xf32>
    %158 = arith.mulf %157, %144 : vector<16x64xf32>
    %cst_56 = arith.constant 0.000000e+00 : f32
    %159 = vector.broadcast %cst_56 : f32 to vector<16x64xf32>
    %160 = arith.subf %159, %138 : vector<16x64xf32>
    %161 = arith.mulf %160, %138 : vector<16x64xf32>
    %162 = math.exp %161 : vector<16x64xf32>
    %163 = arith.mulf %158, %162 : vector<16x64xf32>
    %cst_57 = arith.constant 1.000000e+00 : f32
    %164 = vector.broadcast %cst_57 : f32 to vector<16x64xf32>
    %165 = arith.subf %164, %163 : vector<16x64xf32>
    %cst_58 = arith.constant 0.000000e+00 : f32
    %166 = vector.broadcast %cst_58 : f32 to vector<16x64xf32>
    %167 = arith.cmpf oge, %137, %166 : vector<16x64xf32>
    %cst_59 = arith.constant 0.000000e+00 : f32
    %168 = vector.broadcast %cst_59 : f32 to vector<16x64xf32>
    %169 = arith.subf %168, %165 : vector<16x64xf32>
    %170 = arith.select %167, %165, %169 : vector<16x64xi1>, vector<16x64xf32>
    %cst_60 = arith.constant 5.000000e-01 : f32
    %171 = vector.broadcast %cst_60 : f32 to vector<16x64xf32>
    %172 = arith.mulf %171, %135 : vector<16x64xf32>
    %cst_61 = arith.constant 1.000000e+00 : f32
    %173 = vector.broadcast %cst_61 : f32 to vector<16x64xf32>
    %174 = arith.addf %173, %170 : vector<16x64xf32>
    %175 = arith.mulf %172, %174 : vector<16x64xf32>
    %176 = vector.extract_strided_slice %134 {offsets = [0, 64], sizes = [16, 64], strides = [1, 1]} : vector<16x128xf32> to vector<16x64xf32>
    %177 = arith.mulf %175, %176 : vector<16x64xf32>
    %c0_62 = arith.constant 0 : index
    %c0_63 = arith.constant 0 : index
    %178 = vector.load %arg7[%c0_62, %c0_63] : memref<1x64xf32, #tpu.memory_space<vmem>>, vector<1x64xf32>
    %cst_64 = arith.constant dense<0.000000e+00> : vector<16xf32>
    %179 = vector.multi_reduction <add>, %177, %cst_64 [1] : vector<16x64xf32> to vector<16xf32>
    %180 = vector.shape_cast %179 : vector<16xf32> to vector<16x1xf32>
    %cst_65 = arith.constant 6.400000e+01 : f32
    %181 = vector.broadcast %cst_65 : f32 to vector<16x1xf32>
    %182 = arith.divf %180, %181 : vector<16x1xf32>
    %183 = vector.broadcast %182 : vector<16x1xf32> to vector<16x64xf32>
    %184 = arith.subf %177, %183 : vector<16x64xf32>
    %185 = arith.mulf %184, %184 : vector<16x64xf32>
    %cst_66 = arith.constant dense<0.000000e+00> : vector<16xf32>
    %186 = vector.multi_reduction <add>, %185, %cst_66 [1] : vector<16x64xf32> to vector<16xf32>
    %187 = vector.shape_cast %186 : vector<16xf32> to vector<16x1xf32>
    %cst_67 = arith.constant 6.400000e+01 : f32
    %188 = vector.broadcast %cst_67 : f32 to vector<16x1xf32>
    %189 = arith.divf %187, %188 : vector<16x1xf32>
    %cst_68 = arith.constant 9.99999974E-6 : f32
    %190 = vector.broadcast %cst_68 : f32 to vector<16x1xf32>
    %191 = arith.addf %189, %190 : vector<16x1xf32>
    %192 = math.rsqrt %191 : vector<16x1xf32>
    %193 = vector.broadcast %192 : vector<16x1xf32> to vector<16x64xf32>
    %194 = arith.mulf %184, %193 : vector<16x64xf32>
    %195 = vector.broadcast %178 : vector<1x64xf32> to vector<16x64xf32>
    %196 = arith.mulf %194, %195 : vector<16x64xf32>
    %c0_69 = arith.constant 0 : index
    %c0_70 = arith.constant 0 : index
    %197 = vector.load %arg8[%c0_69, %c0_70] : memref<64x32xf32, #tpu.memory_space<vmem>>, vector<64x32xf32>
    %cst_71 = arith.constant dense<0.000000e+00> : vector<16x32xf32>
    %198 = tpu.matmul %196, %197, %cst_71 {dimension_numbers = #tpu.dot_dimension_numbers<[1], [0], [0], [1], [0, 0, 1, 1], [], []>} : vector<16x64xf32>, vector<64x32xf32>, vector<16x32xf32> -> vector<16x32xf32>
    %199 = arith.addf %113, %198 : vector<16x32xf32>
    %c0_72 = arith.constant 0 : index
    %c0_73 = arith.constant 0 : index
    %200 = vector.load %arg9[%c0_72, %c0_73] : memref<16x32xf32, #tpu.memory_space<vmem>>, vector<16x32xf32>
    tpu.vector_store %arg9[%c0_72, %c0_73], %199 {strides = array<i32>} : memref<16x32xf32, #tpu.memory_space<vmem>>, vector<16x32xf32>,
    return
  }
}

</mosaic_0001>

<llo_original>
// kernel: tpu_custom_call.1
$region0: #{tpu_custom_call.1}
  #allocation0 [shape = 'u32[]', space=smem, size = 0x4, offset = 0x4, fixed_abs, tag = 'smem constant byte address 0x4 - core index']
  #allocation1 [shape = 'u32[144,128]{1,0:T(1,128)}', space=vmem, size = 0x12000, scoped, tag = 'internal scratch']
  %s0 = inlined_call_operand.hbm [shape: f32[16,32], index: 0, kind: input, shape index: {}]
  %s1 = inlined_call_operand.vmem [shape: f32[32,96], index: 1, kind: input, shape index: {}]
  %s2 = inlined_call_operand.vmem [shape: f32[32,32], index: 2, kind: input, shape index: {}]
  %s3 = inlined_call_operand.vmem [shape: f32[1,32], index: 3, kind: input, shape index: {}]
  %s4 = inlined_call_operand.vmem [shape: f32[1,32], index: 4, kind: input, shape index: {}]
  %s5 = inlined_call_operand.vmem [shape: f32[1,32], index: 5, kind: input, shape index: {}]
  %s6 = inlined_call_operand.vmem [shape: f32[32,128], index: 6, kind: input, shape index: {}]
  %s7 = inlined_call_operand.vmem [shape: f32[1,64], index: 7, kind: input, shape index: {}]
  %s8 = inlined_call_operand.vmem [shape: f32[64,32], index: 8, kind: input, shape index: {}]
  %s9 = inlined_call_operand.hbm [shape: f32[16,32], index: 9, kind: output, shape index: {}]
  %s10 = sld [smem:[#allocation0]]
  $region50: #{tpu_custom_call.1} parent=0
    _
  %s12 = ssub.s32 1, %s10
  %s13 = scalar_select 0, %s12, %s10
  $region1: #{tpu_custom_call.1} parent=0
    #allocation2 [shape = 'u8[8192]{0}', space=vmem, size = 0x2000, scoped, tag = 'input window, operand 0, single buffered']
    #allocation3 [shape = 's32[1]{0}', space=sflag, size = 0x4, scoped, tag = 'scoped memory for tpu_custom_call.1']
    #allocation4 [shape = 's32[1]{0}', space=sflag, size = 0x4, scoped, tag = 'scoped memory for tpu_custom_call.1']
    #allocation5 [shape = 'u8[8192]{0}', space=vmem, size = 0x2000, scoped, tag = 'output window, operand 0, single buffered']
    %14 = vsyncpa [#allocation3], 0
    %15 = vsyncpa [#allocation4], 0
    // Predicated region
    $region2: #{tpu_custom_call.1} parent=1 // pred_check
      _
    $region3: #{tpu_custom_call.1} parent=1 // pred_check_branch
      %17 = sbr.rel (0) target = $region5
    $region4: #{tpu_custom_call.1} parent=1 // pred_region
      %s19 = ssub.s32 256, 256
      %20 = vsyncadd [#allocation3], %s19
      %s21 = sshll.u32 [#allocation2], 4
      %s22 = int_to_ptr.vmem [resolvable:$true] %s21
      %27 = dma.hbm_to_vmem [thread:$0]  %s0, 256, %s22, [#allocation3], 128, 128, 8
    $region5: #{tpu_custom_call.1} parent=1 // pred_fallthru
      _
    // Predicated region
    $region6: #{tpu_custom_call.1} parent=1 // pred_check
      _
    $region7: #{tpu_custom_call.1} parent=1 // pred_check_branch
      %29 = sbr.rel (0) target = $region9
    $region8: #{tpu_custom_call.1} parent=1 // pred_region
      _
    $region9: #{tpu_custom_call.1} parent=1 // pred_fallthru
      _
    // Predicated region
    $region10: #{tpu_custom_call.1} parent=1 // pred_check
      _
    $region11: #{tpu_custom_call.1} parent=1 // pred_check_branch
      %31 = sbr.rel (0) target = $region13
    $region12: #{tpu_custom_call.1} parent=1 // pred_region
      _
    $region13: #{tpu_custom_call.1} parent=1 // pred_fallthru
      _
    // Predicated region
    $region14: #{tpu_custom_call.1} parent=1 // pred_check
      _
    $region15: #{tpu_custom_call.1} parent=1 // pred_check_branch
      %33 = sbr.rel (0) target = $region17
    $region16: #{tpu_custom_call.1} parent=1 // pred_region
      _
    $region17: #{tpu_custom_call.1} parent=1 // pred_fallthru
      _
    // Predicated region
    $region18: #{tpu_custom_call.1} parent=1 // pred_check
      _
    $region19: #{tpu_custom_call.1} parent=1 // pred_check_branch
      %35 = sbr.rel (0) target = $region21
    $region20: #{tpu_custom_call.1} parent=1 // pred_region
      _
    $region21: #{tpu_custom_call.1} parent=1 // pred_fallthru
      _
    // Predicated region
    $region22: #{tpu_custom_call.1} parent=1 // pred_check
      _
    $region23: #{tpu_custom_call.1} parent=1 // pred_check_branch
      %37 = sbr.rel (0) target = $region25
    $region24: #{tpu_custom_call.1} parent=1 // pred_region
      _
    $region25: #{tpu_custom_call.1} parent=1 // pred_fallthru
      _
    // Predicated region
    $region26: #{tpu_custom_call.1} parent=1 // pred_check
      _
    $region27: #{tpu_custom_call.1} parent=1 // pred_check_branch
      %39 = sbr.rel (0) target = $region29
    $region28: #{tpu_custom_call.1} parent=1 // pred_region
      _
    $region29: #{tpu_custom_call.1} parent=1 // pred_fallthru
      _
    // Predicated region
    $region30: #{tpu_custom_call.1} parent=1 // pred_check
      _
    $region31: #{tpu_custom_call.1} parent=1 // pred_check_branch
      %41 = sbr.rel (0) target = $region33
    $region32: #{tpu_custom_call.1} parent=1 // pred_region
      _
    $region33: #{tpu_custom_call.1} parent=1 // pred_fallthru
      _
    // Predicated region
    $region34: #{tpu_custom_call.1} parent=1 // pred_check
      _
    $region35: #{tpu_custom_call.1} parent=1 // pred_check_branch
      %43 = sbr.rel (0) target = $region37
    $region36: #{tpu_custom_call.1} parent=1 // pred_region
      _
    $region37: #{tpu_custom_call.1} parent=1 // pred_fallthru
      _
    // Predicated region
    $region38: #{tpu_custom_call.1} parent=1 // pred_check
      _
    $region39: #{tpu_custom_call.1} parent=1 // pred_check_branch
      %45 = sbr.rel (0) target = $region41
    $region40: #{tpu_custom_call.1} parent=1 // pred_region
      %46 = dma.done [#allocation3], 256
    $region41: #{tpu_custom_call.1} parent=1 // pred_fallthru
      _
    %v47 = vld [vmem:[#allocation2] sm:$0xff]
    %v48 = vld [vmem:[#allocation2 + $0x8] sm:$0xff]
    %v49 = vld [vmem:[%s3] sm:$0x1]
    %vm50 = vcmask 261120
    %v51 = vsel %vm50, %v47, 0.0
    %52 = vadd.xlane.f32.xlu0 %v51
    %v53 = vpop.xlane.xlu0 %52
    %v54 = vsel %vm50, %v48, 0.0
    %55 = vadd.xlane.f32.xlu0 %v54
    %v56 = vpop.xlane.xlu0 %55
    %v57 = vrcp.pop 32.0
    %v58 = vmul.f32 %v53, %v57
    %v59 = vmul.f32 %v56, %v57
    %v60 = vsub.f32 %v47, %v58
    %v61 = vsub.f32 %v48, %v59
    %v62 = vmul.f32 %v60, %v60
    %v63 = vmul.f32 %v61, %v61
    %v64 = vsel %vm50, %v62, 0.0
    %65 = vadd.xlane.f32.xlu0 %v64
    %v66 = vpop.xlane.xlu0 %65
    %v67 = vsel %vm50, %v63, 0.0
    %68 = vadd.xlane.f32.xlu0 %v67
    %v69 = vpop.xlane.xlu0 %68
    %v70 = vmul.f32 %v66, %v57
    %v71 = vmul.f32 %v69, %v57
    %v72 = vadd.f32 %v70, 1e-05
    %v73 = vadd.f32 %v71, 1e-05
    %v74 = vrsqrt.pop %v72
    %v75 = vrsqrt.pop %v73
    %v76 = vmul.f32 %v60, %v74
    %v77 = vmul.f32 %v61, %v75
    %v79 = vlaneseq
    %v80 = vshrl.u32 %v79, 7
    %v81 = vsub.s32 0, %v80
    %v82 = vrot.slane %v49, %v81
    %v84 = vmul.f32 %v76, %v82
    %v85 = vmul.f32 %v77, %v82
    %v86 = vld [vmem:[%s1] sm:$0xff]
    %v87 = vld [vmem:[%s1 + $0x8] sm:$0xff]
    %v88 = vld [vmem:[%s1 + $0x10] sm:$0xff]
    %v89 = vld [vmem:[%s1 + $0x18] sm:$0xff]
    %v91 = vsel %vm50, %v84, 0
    %v94 = vsel %vm50, %v85, 0
    %96 = vmatprep.subr.mxu0 0.0
    %97 = vmatpush1.msra.mxu0 0.0
    %98 = vmatprep.subr.mxu0 0.0
    %99 = vmatpush1.msra.mxu0 0.0
    %100 = vmatprep.subr.mxu0 0.0
    %101 = vmatpush1.msra.mxu0 0.0
    %102 = vmatprep.subr.mxu0 0.0
    %103 = vmatpush1.msra.mxu0 0.0
    %104 = vmatprep.subr.mxu0 0.0
    %105 = vmatpush1.msra.mxu0 0.0
    %106 = vmatprep.subr.mxu0 0.0
    %107 = vmatpush1.msra.mxu0 0.0
    %108 = vmatprep.subr.mxu0 0.0
    %109 = vmatpush1.msra.mxu0 0.0
    %110 = vmatprep.subr.mxu0 0.0
    %111 = vmatpush1.msra.mxu0 0.0
    %112 = vmatprep.subr.mxu0 0.0
    %113 = vmatpush1.msra.mxu0 0.0
    %114 = vmatprep.subr.mxu0 0.0
    %115 = vmatpush1.msra.mxu0 0.0
    %116 = vmatprep.subr.mxu0 0.0
    %117 = vmatpush1.msra.mxu0 0.0
    %118 = vmatprep.subr.mxu0 0.0
    %119 = vmatpush1.msra.mxu0 0.0
    %120 = vmatprep.subr.mxu0 0.0
    %121 = vmatpush1.msra.mxu0 %v89
    %122 = vmatprep.subr.mxu0 0.0
    %123 = vmatpush1.msra.mxu0 %v88
    %124 = vmatprep.subr.mxu0 0.0
    %125 = vmatpush1.msra.mxu0 %v87
    %126 = vmatprep.subr.mxu0 0.0
    %127 = vmatpush1.msra.mxu0 %v86
    %128 = vmatprep.subr.mxu0 0.0
    %129 = vmatpush2.msra.mxu0 0.0
    %130 = vmatprep.subr.mxu0 0.0
    %131 = vmatpush2.msra.mxu0 0.0
    %132 = vmatprep.subr.mxu0 0.0
    %133 = vmatpush2.msra.mxu0 0.0
    %134 = vmatprep.subr.mxu0 0.0
    %135 = vmatpush2.msra.mxu0 0.0
    %136 = vmatprep.subr.mxu0 0.0
    %137 = vmatpush2.msra.mxu0 0.0
    %138 = vmatprep.subr.mxu0 0.0
    %139 = vmatpush2.msra.mxu0 0.0
    %140 = vmatprep.subr.mxu0 0.0
    %141 = vmatpush2.msra.mxu0 0.0
    %142 = vmatprep.subr.mxu0 0.0
    %143 = vmatpush2.msra.mxu0 0.0
    %144 = vmatprep.subr.mxu0 0.0
    %145 = vmatpush2.msra.mxu0 0.0
    %146 = vmatprep.subr.mxu0 0.0
    %147 = vmatpush2.msra.mxu0 0.0
    %148 = vmatprep.subr.mxu0 0.0
    %149 = vmatpush2.msra.mxu0 0.0
    %150 = vmatprep.subr.mxu0 0.0
    %151 = vmatpush2.msra.mxu0 0.0
    %152 = vmatprep.subr.mxu0 0.0
    %153 = vmatpush2.msra.mxu0 0.0
    %154 = vmatprep.subr.mxu0 0.0
    %155 = vmatpush2.msra.mxu0 0.0
    %156 = vmatprep.subr.mxu0 0.0
    %157 = vmatpush2.msra.mxu0 0.0
    %158 = vmatprep.subr.mxu0 0.0
    %159 = vmatpush2.msra.mxu0 0.0
    %160 = vmatprep.mubr.f32.mxu0 0.0
    %161 = vmatmul.mubr.f32.gmra.mxu0 %v91
    %v162 = vpop.f32.mrf.mxu0
    %v163 = vadd.f32 0.0, %v162
    %v164 = vpop.f32.mrf.mxu0
    %165 = vmatprep.mubr.f32.mxu0 0.0
    %166 = vmatmul.mubr.f32.gmra.mxu0 %v94
    %v167 = vpop.f32.mrf.mxu0
    %v168 = vadd.f32 0.0, %v167
    %v169 = vpop.f32.mrf.mxu0
    %170 = vdwg.mxu0
    %v171 = vmul.f32 %v163, 0.35355338
    %v172 = vmul.f32 %v168, 0.35355338
    %174 = vrot.lane.b32.xlu0 %v163, 96
    %v175 = vpop.permute.xlu0 %174
    %vm176 = vcmask 64512
    %v178 = vsel %vm176, %v171, 0
    %v180 = vsel %vm176, %v175, 0
    %182 = vmatprep.subr.mxu0 0.0
    %183 = vmatpush1.xpose.msra.mxu0 0.0
    %184 = vmatprep.subr.mxu0 0.0
    %185 = vmatpush1.xpose.msra.mxu0 0.0
    %186 = vmatprep.subr.mxu0 0.0
    %187 = vmatpush1.xpose.msra.mxu0 0.0
    %188 = vmatprep.subr.mxu0 0.0
    %189 = vmatpush1.xpose.msra.mxu0 0.0
    %190 = vmatprep.subr.mxu0 0.0
    %191 = vmatpush1.xpose.msra.mxu0 0.0
    %192 = vmatprep.subr.mxu0 0.0
    %193 = vmatpush1.xpose.msra.mxu0 0.0
    %194 = vmatprep.subr.mxu0 0.0
    %195 = vmatpush1.xpose.msra.mxu0 0.0
    %196 = vmatprep.subr.mxu0 0.0
    %197 = vmatpush1.xpose.msra.mxu0 0.0
    %198 = vmatprep.subr.mxu0 0.0
    %199 = vmatpush1.xpose.msra.mxu0 0.0
    %200 = vmatprep.subr.mxu0 0.0
    %201 = vmatpush1.xpose.msra.mxu0 0.0
    %202 = vmatprep.subr.mxu0 0.0
    %203 = vmatpush1.xpose.msra.mxu0 0.0
    %204 = vmatprep.subr.mxu0 0.0
    %205 = vmatpush1.xpose.msra.mxu0 0.0
    %206 = vmatprep.subr.mxu0 0.0
    %207 = vmatpush1.xpose.msra.mxu0 0.0
    %208 = vmatprep.subr.mxu0 0.0
    %209 = vmatpush1.xpose.msra.mxu0 0.0
    %210 = vmatprep.subr.mxu0 0.0
    %211 = vmatpush1.xpose.msra.mxu0 0.0
    %212 = vmatprep.subr.mxu0 0.0
    %213 = vmatpush1.xpose.msra.mxu0 %v180
    %214 = vmatprep.subr.mxu0 0.0
    %215 = vmatpush2.xpose.msra.mxu0 0.0
    %216 = vmatprep.subr.mxu0 0.0
    %217 = vmatpush2.xpose.msra.mxu0 0.0
    %218 = vmatprep.subr.mxu0 0.0
    %219 = vmatpush2.xpose.msra.mxu0 0.0
    %220 = vmatprep.subr.mxu0 0.0
    %221 = vmatpush2.xpose.msra.mxu0 0.0
    %222 = vmatprep.subr.mxu0 0.0
    %223 = vmatpush2.xpose.msra.mxu0 0.0
    %224 = vmatprep.subr.mxu0 0.0
    %225 = vmatpush2.xpose.msra.mxu0 0.0
    %226 = vmatprep.subr.mxu0 0.0
    %227 = vmatpush2.xpose.msra.mxu0 0.0
    %228 = vmatprep.subr.mxu0 0.0
    %229 = vmatpush2.xpose.msra.mxu0 0.0
    %230 = vmatprep.subr.mxu0 0.0
    %231 = vmatpush2.xpose.msra.mxu0 0.0
    %232 = vmatprep.subr.mxu0 0.0
    %233 = vmatpush2.xpose.msra.mxu0 0.0
    %234 = vmatprep.subr.mxu0 0.0
    %235 = vmatpush2.xpose.msra.mxu0 0.0
    %236 = vmatprep.subr.mxu0 0.0
    %237 = vmatpush2.xpose.msra.mxu0 0.0
    %238 = vmatprep.subr.mxu0 0.0
    %239 = vmatpush2.xpose.msra.mxu0 0.0
    %240 = vmatprep.subr.mxu0 0.0
    %241 = vmatpush2.xpose.msra.mxu0 0.0
    %242 = vmatprep.subr.mxu0 0.0
    %243 = vmatpush2.xpose.msra.mxu0 0.0
    %244 = vmatprep.subr.mxu0 0.0
    %245 = vmatpush2.xpose.msra.mxu0 0.0
    %246 = vmatprep.mubr.f32.mxu0 0.0
    %247 = vmatmul.mubr.f32.gmra.mxu0 %v178
    %v248 = vpop.f32.mrf.mxu0
    %v249 = vadd.f32 0.0, %v248
    %v250 = vpop.f32.mrf.mxu0
    %251 = vdwg.mxu0
    %253 = vrot.lane.b32.xlu0 %v168, 96
    %v254 = vpop.permute.xlu0 %253
    %v256 = vsel %vm176, %v172, 0
    %v258 = vsel %vm176, %v254, 0
    %260 = vmatprep.subr.mxu0 0.0
    %261 = vmatpush1.xpose.msra.mxu0 0.0
    %262 = vmatprep.subr.mxu0 0.0
    %263 = vmatpush1.xpose.msra.mxu0 0.0
    %264 = vmatprep.subr.mxu0 0.0
    %265 = vmatpush1.xpose.msra.mxu0 0.0
    %266 = vmatprep.subr.mxu0 0.0
    %267 = vmatpush1.xpose.msra.mxu0 0.0
    %268 = vmatprep.subr.mxu0 0.0
    %269 = vmatpush1.xpose.msra.mxu0 0.0
    %270 = vmatprep.subr.mxu0 0.0
    %271 = vmatpush1.xpose.msra.mxu0 0.0
    %272 = vmatprep.subr.mxu0 0.0
    %273 = vmatpush1.xpose.msra.mxu0 0.0
    %274 = vmatprep.subr.mxu0 0.0
    %275 = vmatpush1.xpose.msra.mxu0 0.0
    %276 = vmatprep.subr.mxu0 0.0
    %277 = vmatpush1.xpose.msra.mxu0 0.0
    %278 = vmatprep.subr.mxu0 0.0
    %279 = vmatpush1.xpose.msra.mxu0 0.0
    %280 = vmatprep.subr.mxu0 0.0
    %281 = vmatpush1.xpose.msra.mxu0 0.0
    %282 = vmatprep.subr.mxu0 0.0
    %283 = vmatpush1.xpose.msra.mxu0 0.0
    %284 = vmatprep.subr.mxu0 0.0
    %285 = vmatpush1.xpose.msra.mxu0 0.0
    %286 = vmatprep.subr.mxu0 0.0
    %287 = vmatpush1.xpose.msra.mxu0 0.0
    %288 = vmatprep.subr.mxu0 0.0
    %289 = vmatpush1.xpose.msra.mxu0 0.0
    %290 = vmatprep.subr.mxu0 0.0
    %291 = vmatpush1.xpose.msra.mxu0 %v258
    %292 = vmatprep.subr.mxu0 0.0
    %293 = vmatpush2.xpose.msra.mxu0 0.0
    %294 = vmatprep.subr.mxu0 0.0
    %295 = vmatpush2.xpose.msra.mxu0 0.0
    %296 = vmatprep.subr.mxu0 0.0
    %297 = vmatpush2.xpose.msra.mxu0 0.0
    %298 = vmatprep.subr.mxu0 0.0
    %299 = vmatpush2.xpose.msra.mxu0 0.0
    %300 = vmatprep.subr.mxu0 0.0
    %301 = vmatpush2.xpose.msra.mxu0 0.0
    %302 = vmatprep.subr.mxu0 0.0
    %303 = vmatpush2.xpose.msra.mxu0 0.0
    %304 = vmatprep.subr.mxu0 0.0
    %305 = vmatpush2.xpose.msra.mxu0 0.0
    %306 = vmatprep.subr.mxu0 0.0
    %307 = vmatpush2.xpose.msra.mxu0 0.0
    %308 = vmatprep.subr.mxu0 0.0
    %309 = vmatpush2.xpose.msra.mxu0 0.0
    %310 = vmatprep.subr.mxu0 0.0
    %311 = vmatpush2.xpose.msra.mxu0 0.0
    %312 = vmatprep.subr.mxu0 0.0
    %313 = vmatpush2.xpose.msra.mxu0 0.0
    %314 = vmatprep.subr.mxu0 0.0
    %315 = vmatpush2.xpose.msra.mxu0 0.0
    %316 = vmatprep.subr.mxu0 0.0
    %317 = vmatpush2.xpose.msra.mxu0 0.0
    %318 = vmatprep.subr.mxu0 0.0
    %319 = vmatpush2.xpose.msra.mxu0 0.0
    %320 = vmatprep.subr.mxu0 0.0
    %321 = vmatpush2.xpose.msra.mxu0 0.0
    %322 = vmatprep.subr.mxu0 0.0
    %323 = vmatpush2.xpose.msra.mxu0 0.0
    %324 = vmatprep.mubr.f32.mxu0 0.0
    %325 = vmatmul.mubr.f32.gmra.mxu0 %v256
    %v326 = vpop.f32.mrf.mxu0
    %v327 = vadd.f32 0.0, %v326
    %v328 = vpop.f32.mrf.mxu0
    %329 = vdwg.mxu0
    %v330 = vsel %vm176, %v249, -inf
    %331 = vmax.xlane.f32.xlu0 %v330
    %v332 = vpop.xlane.xlu0 %331
    %v333 = vsel %vm176, %v327, -inf
    %334 = vmax.xlane.f32.xlu0 %v333
    %v335 = vpop.xlane.xlu0 %334
    %v336 = vsub.f32 %v249, %v332
    %v337 = vsub.f32 %v327, %v335
    %v338 = vmul.f32 %v336, 1.442695
    %v339 = vpow.pop %v338
    %v340 = vmul.f32 %v337, 1.442695
    %v341 = vpow.pop %v340
    %v342 = vsel %vm176, %v339, 0.0
    %343 = vadd.xlane.f32.xlu0 %v342
    %v344 = vpop.xlane.xlu0 %343
    %v345 = vsel %vm176, %v341, 0.0
    %346 = vadd.xlane.f32.xlu0 %v345
    %v347 = vpop.xlane.xlu0 %346
    %v348 = vrcp.pop %v344
    %v349 = vrcp.pop %v347
    %v350 = vmul.f32 %v339, %v348
    %v351 = vmul.f32 %v341, %v349
    %352 = vrot.lane.b32.xlu0 %v163, 64
    %v353 = vpop.permute.xlu0 %352
    %v356 = vsel %vm176, %v350, 0
    %358 = vmatprep.subr.mxu0 0.0
    %359 = vmatpush1.msra.mxu0 0.0
    %360 = vmatprep.subr.mxu0 0.0
    %361 = vmatpush1.msra.mxu0 0.0
    %362 = vmatprep.subr.mxu0 0.0
    %363 = vmatpush1.msra.mxu0 0.0
    %364 = vmatprep.subr.mxu0 0.0
    %365 = vmatpush1.msra.mxu0 0.0
    %366 = vmatprep.subr.mxu0 0.0
    %367 = vmatpush1.msra.mxu0 0.0
    %368 = vmatprep.subr.mxu0 0.0
    %369 = vmatpush1.msra.mxu0 0.0
    %370 = vmatprep.subr.mxu0 0.0
    %371 = vmatpush1.msra.mxu0 0.0
    %372 = vmatprep.subr.mxu0 0.0
    %373 = vmatpush1.msra.mxu0 0.0
    %374 = vmatprep.subr.mxu0 0.0
    %375 = vmatpush1.msra.mxu0 0.0
    %376 = vmatprep.subr.mxu0 0.0
    %377 = vmatpush1.msra.mxu0 0.0
    %378 = vmatprep.subr.mxu0 0.0
    %379 = vmatpush1.msra.mxu0 0.0
    %380 = vmatprep.subr.mxu0 0.0
    %381 = vmatpush1.msra.mxu0 0.0
    %382 = vmatprep.subr.mxu0 0.0
    %383 = vmatpush1.msra.mxu0 0.0
    %384 = vmatprep.subr.mxu0 0.0
    %385 = vmatpush1.msra.mxu0 0.0
    %386 = vmatprep.subr.mxu0 0.0
    %387 = vmatpush1.msra.mxu0 0.0
    %388 = vmatprep.subr.mxu0 0.0
    %389 = vmatpush1.msra.mxu0 %v353
    %390 = vmatprep.subr.mxu0 0.0
    %391 = vmatpush2.msra.mxu0 0.0
    %392 = vmatprep.subr.mxu0 0.0
    %393 = vmatpush2.msra.mxu0 0.0
    %394 = vmatprep.subr.mxu0 0.0
    %395 = vmatpush2.msra.mxu0 0.0
    %396 = vmatprep.subr.mxu0 0.0
    %397 = vmatpush2.msra.mxu0 0.0
    %398 = vmatprep.subr.mxu0 0.0
    %399 = vmatpush2.msra.mxu0 0.0
    %400 = vmatprep.subr.mxu0 0.0
    %401 = vmatpush2.msra.mxu0 0.0
    %402 = vmatprep.subr.mxu0 0.0
    %403 = vmatpush2.msra.mxu0 0.0
    %404 = vmatprep.subr.mxu0 0.0
    %405 = vmatpush2.msra.mxu0 0.0
    %406 = vmatprep.subr.mxu0 0.0
    %407 = vmatpush2.msra.mxu0 0.0
    %408 = vmatprep.subr.mxu0 0.0
    %409 = vmatpush2.msra.mxu0 0.0
    %410 = vmatprep.subr.mxu0 0.0
    %411 = vmatpush2.msra.mxu0 0.0
    %412 = vmatprep.subr.mxu0 0.0
    %413 = vmatpush2.msra.mxu0 0.0
    %414 = vmatprep.subr.mxu0 0.0
    %415 = vmatpush2.msra.mxu0 0.0
    %416 = vmatprep.subr.mxu0 0.0
    %417 = vmatpush2.msra.mxu0 0.0
    %418 = vmatprep.subr.mxu0 0.0
    %419 = vmatpush2.msra.mxu0 0.0
    %420 = vmatprep.subr.mxu0 0.0
    %421 = vmatpush2.msra.mxu0 0.0
    %422 = vmatprep.mubr.f32.mxu0 0.0
    %423 = vmatmul.mubr.f32.gmra.mxu0 %v356
    %v424 = vpop.f32.mrf.mxu0
    %v425 = vadd.f32 0.0, %v424
    %v426 = vpop.f32.mrf.mxu0
    %427 = vdwg.mxu0
    %428 = vrot.lane.b32.xlu0 %v168, 64
    %v429 = vpop.permute.xlu0 %428
    %v432 = vsel %vm176, %v351, 0
    %434 = vmatprep.subr.mxu0 0.0
    %435 = vmatpush1.msra.mxu0 0.0
    %436 = vmatprep.subr.mxu0 0.0
    %437 = vmatpush1.msra.mxu0 0.0
    %438 = vmatprep.subr.mxu0 0.0
    %439 = vmatpush1.msra.mxu0 0.0
    %440 = vmatprep.subr.mxu0 0.0
    %441 = vmatpush1.msra.mxu0 0.0
    %442 = vmatprep.subr.mxu0 0.0
    %443 = vmatpush1.msra.mxu0 0.0
    %444 = vmatprep.subr.mxu0 0.0
    %445 = vmatpush1.msra.mxu0 0.0
    %446 = vmatprep.subr.mxu0 0.0
    %447 = vmatpush1.msra.mxu0 0.0
    %448 = vmatprep.subr.mxu0 0.0
    %449 = vmatpush1.msra.mxu0 0.0
    %450 = vmatprep.subr.mxu0 0.0
    %451 = vmatpush1.msra.mxu0 0.0
    %452 = vmatprep.subr.mxu0 0.0
    %453 = vmatpush1.msra.mxu0 0.0
    %454 = vmatprep.subr.mxu0 0.0
    %455 = vmatpush1.msra.mxu0 0.0
    %456 = vmatprep.subr.mxu0 0.0
    %457 = vmatpush1.msra.mxu0 0.0
    %458 = vmatprep.subr.mxu0 0.0
    %459 = vmatpush1.msra.mxu0 0.0
    %460 = vmatprep.subr.mxu0 0.0
    %461 = vmatpush1.msra.mxu0 0.0
    %462 = vmatprep.subr.mxu0 0.0
    %463 = vmatpush1.msra.mxu0 0.0
    %464 = vmatprep.subr.mxu0 0.0
    %465 = vmatpush1.msra.mxu0 %v429
    %466 = vmatprep.subr.mxu0 0.0
    %467 = vmatpush2.msra.mxu0 0.0
    %468 = vmatprep.subr.mxu0 0.0
    %469 = vmatpush2.msra.mxu0 0.0
    %470 = vmatprep.subr.mxu0 0.0
    %471 = vmatpush2.msra.mxu0 0.0
    %472 = vmatprep.subr.mxu0 0.0
    %473 = vmatpush2.msra.mxu0 0.0
    %474 = vmatprep.subr.mxu0 0.0
    %475 = vmatpush2.msra.mxu0 0.0
    %476 = vmatprep.subr.mxu0 0.0
    %477 = vmatpush2.msra.mxu0 0.0
    %478 = vmatprep.subr.mxu0 0.0
    %479 = vmatpush2.msra.mxu0 0.0
    %480 = vmatprep.subr.mxu0 0.0
    %481 = vmatpush2.msra.mxu0 0.0
    %482 = vmatprep.subr.mxu0 0.0
    %483 = vmatpush2.msra.mxu0 0.0
    %484 = vmatprep.subr.mxu0 0.0
    %485 = vmatpush2.msra.mxu0 0.0
    %486 = vmatprep.subr.mxu0 0.0
    %487 = vmatpush2.msra.mxu0 0.0
    %488 = vmatprep.subr.mxu0 0.0
    %489 = vmatpush2.msra.mxu0 0.0
    %490 = vmatprep.subr.mxu0 0.0
    %491 = vmatpush2.msra.mxu0 0.0
    %492 = vmatprep.subr.mxu0 0.0
    %493 = vmatpush2.msra.mxu0 0.0
    %494 = vmatprep.subr.mxu0 0.0
    %495 = vmatpush2.msra.mxu0 0.0
    %496 = vmatprep.subr.mxu0 0.0
    %497 = vmatpush2.msra.mxu0 0.0
    %498 = vmatprep.mubr.f32.mxu0 0.0
    %499 = vmatmul.mubr.f32.gmra.mxu0 %v432
    %v500 = vpop.f32.mrf.mxu0
    %v501 = vadd.f32 0.0, %v500
    %v502 = vpop.f32.mrf.mxu0
    %503 = vdwg.mxu0
    %504 = vrot.lane.b32.xlu0 %v171, 120
    %v505 = vpop.permute.xlu0 %504
    %506 = vrot.lane.b32.xlu0 %v163, 88
    %v507 = vpop.permute.xlu0 %506
    %v508 = vsel %vm176, %v505, 0
    %v510 = vsel %vm176, %v507, 0
    %512 = vmatprep.subr.mxu0 0.0
    %513 = vmatpush1.xpose.msra.mxu0 0.0
    %514 = vmatprep.subr.mxu0 0.0
    %515 = vmatpush1.xpose.msra.mxu0 0.0
    %516 = vmatprep.subr.mxu0 0.0
    %517 = vmatpush1.xpose.msra.mxu0 0.0
    %518 = vmatprep.subr.mxu0 0.0
    %519 = vmatpush1.xpose.msra.mxu0 0.0
    %520 = vmatprep.subr.mxu0 0.0
    %521 = vmatpush1.xpose.msra.mxu0 0.0
    %522 = vmatprep.subr.mxu0 0.0
    %523 = vmatpush1.xpose.msra.mxu0 0.0
    %524 = vmatprep.subr.mxu0 0.0
    %525 = vmatpush1.xpose.msra.mxu0 0.0
    %526 = vmatprep.subr.mxu0 0.0
    %527 = vmatpush1.xpose.msra.mxu0 0.0
    %528 = vmatprep.subr.mxu0 0.0
    %529 = vmatpush1.xpose.msra.mxu0 0.0
    %530 = vmatprep.subr.mxu0 0.0
    %531 = vmatpush1.xpose.msra.mxu0 0.0
    %532 = vmatprep.subr.mxu0 0.0
    %533 = vmatpush1.xpose.msra.mxu0 0.0
    %534 = vmatprep.subr.mxu0 0.0
    %535 = vmatpush1.xpose.msra.mxu0 0.0
    %536 = vmatprep.subr.mxu0 0.0
    %537 = vmatpush1.xpose.msra.mxu0 0.0
    %538 = vmatprep.subr.mxu0 0.0
    %539 = vmatpush1.xpose.msra.mxu0 0.0
    %540 = vmatprep.subr.mxu0 0.0
    %541 = vmatpush1.xpose.msra.mxu0 0.0
    %542 = vmatprep.subr.mxu0 0.0
    %543 = vmatpush1.xpose.msra.mxu0 %v510
    %544 = vmatprep.subr.mxu0 0.0
    %545 = vmatpush2.xpose.msra.mxu0 0.0
    %546 = vmatprep.subr.mxu0 0.0
    %547 = vmatpush2.xpose.msra.mxu0 0.0
    %548 = vmatprep.subr.mxu0 0.0
    %549 = vmatpush2.xpose.msra.mxu0 0.0
    %550 = vmatprep.subr.mxu0 0.0
    %551 = vmatpush2.xpose.msra.mxu0 0.0
    %552 = vmatprep.subr.mxu0 0.0
    %553 = vmatpush2.xpose.msra.mxu0 0.0
    %554 = vmatprep.subr.mxu0 0.0
    %555 = vmatpush2.xpose.msra.mxu0 0.0
    %556 = vmatprep.subr.mxu0 0.0
    %557 = vmatpush2.xpose.msra.mxu0 0.0
    %558 = vmatprep.subr.mxu0 0.0
    %559 = vmatpush2.xpose.msra.mxu0 0.0
    %560 = vmatprep.subr.mxu0 0.0
    %561 = vmatpush2.xpose.msra.mxu0 0.0
    %562 = vmatprep.subr.mxu0 0.0
    %563 = vmatpush2.xpose.msra.mxu0 0.0
    %564 = vmatprep.subr.mxu0 0.0
    %565 = vmatpush2.xpose.msra.mxu0 0.0
    %566 = vmatprep.subr.mxu0 0.0
    %567 = vmatpush2.xpose.msra.mxu0 0.0
    %568 = vmatprep.subr.mxu0 0.0
    %569 = vmatpush2.xpose.msra.mxu0 0.0
    %570 = vmatprep.subr.mxu0 0.0
    %571 = vmatpush2.xpose.msra.mxu0 0.0
    %572 = vmatprep.subr.mxu0 0.0
    %573 = vmatpush2.xpose.msra.mxu0 0.0
    %574 = vmatprep.subr.mxu0 0.0
    %575 = vmatpush2.xpose.msra.mxu0 0.0
    %576 = vmatprep.mubr.f32.mxu0 0.0
    %577 = vmatmul.mubr.f32.gmra.mxu0 %v508
    %v578 = vpop.f32.mrf.mxu0
    %v579 = vadd.f32 0.0, %v578
    %v580 = vpop.f32.mrf.mxu0
    %581 = vdwg.mxu0
    %582 = vrot.lane.b32.xlu0 %v172, 120
    %v583 = vpop.permute.xlu0 %582
    %584 = vrot.lane.b32.xlu0 %v168, 88
    %v585 = vpop.permute.xlu0 %584
    %v586 = vsel %vm176, %v583, 0
    %v588 = vsel %vm176, %v585, 0
    %590 = vmatprep.subr.mxu0 0.0
    %591 = vmatpush1.xpose.msra.mxu0 0.0
    %592 = vmatprep.subr.mxu0 0.0
    %593 = vmatpush1.xpose.msra.mxu0 0.0
    %594 = vmatprep.subr.mxu0 0.0
    %595 = vmatpush1.xpose.msra.mxu0 0.0
    %596 = vmatprep.subr.mxu0 0.0
    %597 = vmatpush1.xpose.msra.mxu0 0.0
    %598 = vmatprep.subr.mxu0 0.0
    %599 = vmatpush1.xpose.msra.mxu0 0.0
    %600 = vmatprep.subr.mxu0 0.0
    %601 = vmatpush1.xpose.msra.mxu0 0.0
    %602 = vmatprep.subr.mxu0 0.0
    %603 = vmatpush1.xpose.msra.mxu0 0.0
    %604 = vmatprep.subr.mxu0 0.0
    %605 = vmatpush1.xpose.msra.mxu0 0.0
    %606 = vmatprep.subr.mxu0 0.0
    %607 = vmatpush1.xpose.msra.mxu0 0.0
    %608 = vmatprep.subr.mxu0 0.0
    %609 = vmatpush1.xpose.msra.mxu0 0.0
    %610 = vmatprep.subr.mxu0 0.0
    %611 = vmatpush1.xpose.msra.mxu0 0.0
    %612 = vmatprep.subr.mxu0 0.0
    %613 = vmatpush1.xpose.msra.mxu0 0.0
    %614 = vmatprep.subr.mxu0 0.0
    %615 = vmatpush1.xpose.msra.mxu0 0.0
    %616 = vmatprep.subr.mxu0 0.0
    %617 = vmatpush1.xpose.msra.mxu0 0.0
    %618 = vmatprep.subr.mxu0 0.0
    %619 = vmatpush1.xpose.msra.mxu0 0.0
    %620 = vmatprep.subr.mxu0 0.0
    %621 = vmatpush1.xpose.msra.mxu0 %v588
    %622 = vmatprep.subr.mxu0 0.0
    %623 = vmatpush2.xpose.msra.mxu0 0.0
    %624 = vmatprep.subr.mxu0 0.0
    %625 = vmatpush2.xpose.msra.mxu0 0.0
    %626 = vmatprep.subr.mxu0 0.0
    %627 = vmatpush2.xpose.msra.mxu0 0.0
    %628 = vmatprep.subr.mxu0 0.0
    %629 = vmatpush2.xpose.msra.mxu0 0.0
    %630 = vmatprep.subr.mxu0 0.0
    %631 = vmatpush2.xpose.msra.mxu0 0.0
    %632 = vmatprep.subr.mxu0 0.0
    %633 = vmatpush2.xpose.msra.mxu0 0.0
    %634 = vmatprep.subr.mxu0 0.0
    %635 = vmatpush2.xpose.msra.mxu0 0.0
    %636 = vmatprep.subr.mxu0 0.0
    %637 = vmatpush2.xpose.msra.mxu0 0.0
    %638 = vmatprep.subr.mxu0 0.0
    %639 = vmatpush2.xpose.msra.mxu0 0.0
    %640 = vmatprep.subr.mxu0 0.0
    %641 = vmatpush2.xpose.msra.mxu0 0.0
    %642 = vmatprep.subr.mxu0 0.0
    %643 = vmatpush2.xpose.msra.mxu0 0.0
    %644 = vmatprep.subr.mxu0 0.0
    %645 = vmatpush2.xpose.msra.mxu0 0.0
    %646 = vmatprep.subr.mxu0 0.0
    %647 = vmatpush2.xpose.msra.mxu0 0.0
    %648 = vmatprep.subr.mxu0 0.0
    %649 = vmatpush2.xpose.msra.mxu0 0.0
    %650 = vmatprep.subr.mxu0 0.0
    %651 = vmatpush2.xpose.msra.mxu0 0.0
    %652 = vmatprep.subr.mxu0 0.0
    %653 = vmatpush2.xpose.msra.mxu0 0.0
    %654 = vmatprep.mubr.f32.mxu0 0.0
    %655 = vmatmul.mubr.f32.gmra.mxu0 %v586
    %v656 = vpop.f32.mrf.mxu0
    %v657 = vadd.f32 0.0, %v656
    %v658 = vpop.f32.mrf.mxu0
    %659 = vdwg.mxu0
    %v660 = vsel %vm176, %v579, -inf
    %661 = vmax.xlane.f32.xlu0 %v660
    %v662 = vpop.xlane.xlu0 %661
    %v663 = vsel %vm176, %v657, -inf
    %664 = vmax.xlane.f32.xlu0 %v663
    %v665 = vpop.xlane.xlu0 %664
    %v666 = vsub.f32 %v579, %v662
    %v667 = vsub.f32 %v657, %v665
    %v668 = vmul.f32 %v666, 1.442695
    %v669 = vpow.pop %v668
    %v670 = vmul.f32 %v667, 1.442695
    %v671 = vpow.pop %v670
    %v672 = vsel %vm176, %v669, 0.0
    %673 = vadd.xlane.f32.xlu0 %v672
    %v674 = vpop.xlane.xlu0 %673
    %v675 = vsel %vm176, %v671, 0.0
    %676 = vadd.xlane.f32.xlu0 %v675
    %v677 = vpop.xlane.xlu0 %676
    %v678 = vrcp.pop %v674
    %v679 = vrcp.pop %v677
    %v680 = vmul.f32 %v669, %v678
    %v681 = vmul.f32 %v671, %v679
    %682 = vrot.lane.b32.xlu0 %v163, 56
    %v683 = vpop.permute.xlu0 %682
    %v686 = vsel %vm176, %v680, 0
    %688 = vmatprep.subr.mxu0 0.0
    %689 = vmatpush1.msra.mxu0 0.0
    %690 = vmatprep.subr.mxu0 0.0
    %691 = vmatpush1.msra.mxu0 0.0
    %692 = vmatprep.subr.mxu0 0.0
    %693 = vmatpush1.msra.mxu0 0.0
    %694 = vmatprep.subr.mxu0 0.0
    %695 = vmatpush1.msra.mxu0 0.0
    %696 = vmatprep.subr.mxu0 0.0
    %697 = vmatpush1.msra.mxu0 0.0
    %698 = vmatprep.subr.mxu0 0.0
    %699 = vmatpush1.msra.mxu0 0.0
    %700 = vmatprep.subr.mxu0 0.0
    %701 = vmatpush1.msra.mxu0 0.0
    %702 = vmatprep.subr.mxu0 0.0
    %703 = vmatpush1.msra.mxu0 0.0
    %704 = vmatprep.subr.mxu0 0.0
    %705 = vmatpush1.msra.mxu0 0.0
    %706 = vmatprep.subr.mxu0 0.0
    %707 = vmatpush1.msra.mxu0 0.0
    %708 = vmatprep.subr.mxu0 0.0
    %709 = vmatpush1.msra.mxu0 0.0
    %710 = vmatprep.subr.mxu0 0.0
    %711 = vmatpush1.msra.mxu0 0.0
    %712 = vmatprep.subr.mxu0 0.0
    %713 = vmatpush1.msra.mxu0 0.0
    %714 = vmatprep.subr.mxu0 0.0
    %715 = vmatpush1.msra.mxu0 0.0
    %716 = vmatprep.subr.mxu0 0.0
    %717 = vmatpush1.msra.mxu0 0.0
    %718 = vmatprep.subr.mxu0 0.0
    %719 = vmatpush1.msra.mxu0 %v683
    %720 = vmatprep.subr.mxu0 0.0
    %721 = vmatpush2.msra.mxu0 0.0
    %722 = vmatprep.subr.mxu0 0.0
    %723 = vmatpush2.msra.mxu0 0.0
    %724 = vmatprep.subr.mxu0 0.0
    %725 = vmatpush2.msra.mxu0 0.0
    %726 = vmatprep.subr.mxu0 0.0
    %727 = vmatpush2.msra.mxu0 0.0
    %728 = vmatprep.subr.mxu0 0.0
    %729 = vmatpush2.msra.mxu0 0.0
    %730 = vmatprep.subr.mxu0 0.0
    %731 = vmatpush2.msra.mxu0 0.0
    %732 = vmatprep.subr.mxu0 0.0
    %733 = vmatpush2.msra.mxu0 0.0
    %734 = vmatprep.subr.mxu0 0.0
    %735 = vmatpush2.msra.mxu0 0.0
    %736 = vmatprep.subr.mxu0 0.0
    %737 = vmatpush2.msra.mxu0 0.0
    %738 = vmatprep.subr.mxu0 0.0
    %739 = vmatpush2.msra.mxu0 0.0
    %740 = vmatprep.subr.mxu0 0.0
    %741 = vmatpush2.msra.mxu0 0.0
    %742 = vmatprep.subr.mxu0 0.0
    %743 = vmatpush2.msra.mxu0 0.0
    %744 = vmatprep.subr.mxu0 0.0
    %745 = vmatpush2.msra.mxu0 0.0
    %746 = vmatprep.subr.mxu0 0.0
    %747 = vmatpush2.msra.mxu0 0.0
    %748 = vmatprep.subr.mxu0 0.0
    %749 = vmatpush2.msra.mxu0 0.0
    %750 = vmatprep.subr.mxu0 0.0
    %751 = vmatpush2.msra.mxu0 0.0
    %752 = vmatprep.mubr.f32.mxu0 0.0
    %753 = vmatmul.mubr.f32.gmra.mxu0 %v686
    %v754 = vpop.f32.mrf.mxu0
    %v755 = vadd.f32 0.0, %v754
    %v756 = vpop.f32.mrf.mxu0
    %757 = vdwg.mxu0
    %758 = vrot.lane.b32.xlu0 %v168, 56
    %v759 = vpop.permute.xlu0 %758
    %v762 = vsel %vm176, %v681, 0
    %764 = vmatprep.subr.mxu0 0.0
    %765 = vmatpush1.msra.mxu0 0.0
    %766 = vmatprep.subr.mxu0 0.0
    %767 = vmatpush1.msra.mxu0 0.0
    %768 = vmatprep.subr.mxu0 0.0
    %769 = vmatpush1.msra.mxu0 0.0
    %770 = vmatprep.subr.mxu0 0.0
    %771 = vmatpush1.msra.mxu0 0.0
    %772 = vmatprep.subr.mxu0 0.0
    %773 = vmatpush1.msra.mxu0 0.0
    %774 = vmatprep.subr.mxu0 0.0
    %775 = vmatpush1.msra.mxu0 0.0
    %776 = vmatprep.subr.mxu0 0.0
    %777 = vmatpush1.msra.mxu0 0.0
    %778 = vmatprep.subr.mxu0 0.0
    %779 = vmatpush1.msra.mxu0 0.0
    %780 = vmatprep.subr.mxu0 0.0
    %781 = vmatpush1.msra.mxu0 0.0
    %782 = vmatprep.subr.mxu0 0.0
    %783 = vmatpush1.msra.mxu0 0.0
    %784 = vmatprep.subr.mxu0 0.0
    %785 = vmatpush1.msra.mxu0 0.0
    %786 = vmatprep.subr.mxu0 0.0
    %787 = vmatpush1.msra.mxu0 0.0
    %788 = vmatprep.subr.mxu0 0.0
    %789 = vmatpush1.msra.mxu0 0.0
    %790 = vmatprep.subr.mxu0 0.0
    %791 = vmatpush1.msra.mxu0 0.0
    %792 = vmatprep.subr.mxu0 0.0
    %793 = vmatpush1.msra.mxu0 0.0
    %794 = vmatprep.subr.mxu0 0.0
    %795 = vmatpush1.msra.mxu0 %v759
    %796 = vmatprep.subr.mxu0 0.0
    %797 = vmatpush2.msra.mxu0 0.0
    %798 = vmatprep.subr.mxu0 0.0
    %799 = vmatpush2.msra.mxu0 0.0
    %800 = vmatprep.subr.mxu0 0.0
    %801 = vmatpush2.msra.mxu0 0.0
    %802 = vmatprep.subr.mxu0 0.0
    %803 = vmatpush2.msra.mxu0 0.0
    %804 = vmatprep.subr.mxu0 0.0
    %805 = vmatpush2.msra.mxu0 0.0
    %806 = vmatprep.subr.mxu0 0.0
    %807 = vmatpush2.msra.mxu0 0.0
    %808 = vmatprep.subr.mxu0 0.0
    %809 = vmatpush2.msra.mxu0 0.0
    %810 = vmatprep.subr.mxu0 0.0
    %811 = vmatpush2.msra.mxu0 0.0
    %812 = vmatprep.subr.mxu0 0.0
    %813 = vmatpush2.msra.mxu0 0.0
    %814 = vmatprep.subr.mxu0 0.0
    %815 = vmatpush2.msra.mxu0 0.0
    %816 = vmatprep.subr.mxu0 0.0
    %817 = vmatpush2.msra.mxu0 0.0
    %818 = vmatprep.subr.mxu0 0.0
    %819 = vmatpush2.msra.mxu0 0.0
    %820 = vmatprep.subr.mxu0 0.0
    %821 = vmatpush2.msra.mxu0 0.0
    %822 = vmatprep.subr.mxu0 0.0
    %823 = vmatpush2.msra.mxu0 0.0
    %824 = vmatprep.subr.mxu0 0.0
    %825 = vmatpush2.msra.mxu0 0.0
    %826 = vmatprep.subr.mxu0 0.0
    %827 = vmatpush2.msra.mxu0 0.0
    %828 = vmatprep.mubr.f32.mxu0 0.0
    %829 = vmatmul.mubr.f32.gmra.mxu0 %v762
    %v830 = vpop.f32.mrf.mxu0
    %v831 = vadd.f32 0.0, %v830
    %v832 = vpop.f32.mrf.mxu0
    %833 = vdwg.mxu0
    %834 = vrot.lane.b32.xlu0 %v171, 112
    %v835 = vpop.permute.xlu0 %834
    %836 = vrot.lane.b32.xlu0 %v163, 80
    %v837 = vpop.permute.xlu0 %836
    %v838 = vsel %vm176, %v835, 0
    %v840 = vsel %vm176, %v837, 0
    %842 = vmatprep.subr.mxu0 0.0
    %843 = vmatpush1.xpose.msra.mxu0 0.0
    %844 = vmatprep.subr.mxu0 0.0
    %845 = vmatpush1.xpose.msra.mxu0 0.0
    %846 = vmatprep.subr.mxu0 0.0
    %847 = vmatpush1.xpose.msra.mxu0 0.0
    %848 = vmatprep.subr.mxu0 0.0
    %849 = vmatpush1.xpose.msra.mxu0 0.0
    %850 = vmatprep.subr.mxu0 0.0
    %851 = vmatpush1.xpose.msra.mxu0 0.0
    %852 = vmatprep.subr.mxu0 0.0
    %853 = vmatpush1.xpose.msra.mxu0 0.0
    %854 = vmatprep.subr.mxu0 0.0
    %855 = vmatpush1.xpose.msra.mxu0 0.0
    %856 = vmatprep.subr.mxu0 0.0
    %857 = vmatpush1.xpose.msra.mxu0 0.0
    %858 = vmatprep.subr.mxu0 0.0
    %859 = vmatpush1.xpose.msra.mxu0 0.0
    %860 = vmatprep.subr.mxu0 0.0
    %861 = vmatpush1.xpose.msra.mxu0 0.0
    %862 = vmatprep.subr.mxu0 0.0
    %863 = vmatpush1.xpose.msra.mxu0 0.0
    %864 = vmatprep.subr.mxu0 0.0
    %865 = vmatpush1.xpose.msra.mxu0 0.0
    %866 = vmatprep.subr.mxu0 0.0
    %867 = vmatpush1.xpose.msra.mxu0 0.0
    %868 = vmatprep.subr.mxu0 0.0
    %869 = vmatpush1.xpose.msra.mxu0 0.0
    %870 = vmatprep.subr.mxu0 0.0
    %871 = vmatpush1.xpose.msra.mxu0 0.0
    %872 = vmatprep.subr.mxu0 0.0
    %873 = vmatpush1.xpose.msra.mxu0 %v840
    %874 = vmatprep.subr.mxu0 0.0
    %875 = vmatpush2.xpose.msra.mxu0 0.0
    %876 = vmatprep.subr.mxu0 0.0
    %877 = vmatpush2.xpose.msra.mxu0 0.0
    %878 = vmatprep.subr.mxu0 0.0
    %879 = vmatpush2.xpose.msra.mxu0 0.0
    %880 = vmatprep.subr.mxu0 0.0
    %881 = vmatpush2.xpose.msra.mxu0 0.0
    %882 = vmatprep.subr.mxu0 0.0
    %883 = vmatpush2.xpose.msra.mxu0 0.0
    %884 = vmatprep.subr.mxu0 0.0
    %885 = vmatpush2.xpose.msra.mxu0 0.0
    %886 = vmatprep.subr.mxu0 0.0
    %887 = vmatpush2.xpose.msra.mxu0 0.0
    %888 = vmatprep.subr.mxu0 0.0
    %889 = vmatpush2.xpose.msra.mxu0 0.0
    %890 = vmatprep.subr.mxu0 0.0
    %891 = vmatpush2.xpose.msra.mxu0 0.0
    %892 = vmatprep.subr.mxu0 0.0
    %893 = vmatpush2.xpose.msra.mxu0 0.0
    %894 = vmatprep.subr.mxu0 0.0
    %895 = vmatpush2.xpose.msra.mxu0 0.0
    %896 = vmatprep.subr.mxu0 0.0
    %897 = vmatpush2.xpose.msra.mxu0 0.0
    %898 = vmatprep.subr.mxu0 0.0
    %899 = vmatpush2.xpose.msra.mxu0 0.0
    %900 = vmatprep.subr.mxu0 0.0
    %901 = vmatpush2.xpose.msra.mxu0 0.0
    %902 = vmatprep.subr.mxu0 0.0
    %903 = vmatpush2.xpose.msra.mxu0 0.0
    %904 = vmatprep.subr.mxu0 0.0
    %905 = vmatpush2.xpose.msra.mxu0 0.0
    %906 = vmatprep.mubr.f32.mxu0 0.0
    %907 = vmatmul.mubr.f32.gmra.mxu0 %v838
    %v908 = vpop.f32.mrf.mxu0
    %v909 = vadd.f32 0.0, %v908
    %v910 = vpop.f32.mrf.mxu0
    %911 = vdwg.mxu0
    %912 = vrot.lane.b32.xlu0 %v172, 112
    %v913 = vpop.permute.xlu0 %912
    %914 = vrot.lane.b32.xlu0 %v168, 80
    %v915 = vpop.permute.xlu0 %914
    %v916 = vsel %vm176, %v913, 0
    %v918 = vsel %vm176, %v915, 0
    %920 = vmatprep.subr.mxu0 0.0
    %921 = vmatpush1.xpose.msra.mxu0 0.0
    %922 = vmatprep.subr.mxu0 0.0
    %923 = vmatpush1.xpose.msra.mxu0 0.0
    %924 = vmatprep.subr.mxu0 0.0
    %925 = vmatpush1.xpose.msra.mxu0 0.0
    %926 = vmatprep.subr.mxu0 0.0
    %927 = vmatpush1.xpose.msra.mxu0 0.0
    %928 = vmatprep.subr.mxu0 0.0
    %929 = vmatpush1.xpose.msra.mxu0 0.0
    %930 = vmatprep.subr.mxu0 0.0
    %931 = vmatpush1.xpose.msra.mxu0 0.0
    %932 = vmatprep.subr.mxu0 0.0
    %933 = vmatpush1.xpose.msra.mxu0 0.0
    %934 = vmatprep.subr.mxu0 0.0
    %935 = vmatpush1.xpose.msra.mxu0 0.0
    %936 = vmatprep.subr.mxu0 0.0
    %937 = vmatpush1.xpose.msra.mxu0 0.0
    %938 = vmatprep.subr.mxu0 0.0
    %939 = vmatpush1.xpose.msra.mxu0 0.0
    %940 = vmatprep.subr.mxu0 0.0
    %941 = vmatpush1.xpose.msra.mxu0 0.0
    %942 = vmatprep.subr.mxu0 0.0
    %943 = vmatpush1.xpose.msra.mxu0 0.0
    %944 = vmatprep.subr.mxu0 0.0
    %945 = vmatpush1.xpose.msra.mxu0 0.0
    %946 = vmatprep.subr.mxu0 0.0
    %947 = vmatpush1.xpose.msra.mxu0 0.0
    %948 = vmatprep.subr.mxu0 0.0
    %949 = vmatpush1.xpose.msra.mxu0 0.0
    %950 = vmatprep.subr.mxu0 0.0
    %951 = vmatpush1.xpose.msra.mxu0 %v918
    %952 = vmatprep.subr.mxu0 0.0
    %953 = vmatpush2.xpose.msra.mxu0 0.0
    %954 = vmatprep.subr.mxu0 0.0
    %955 = vmatpush2.xpose.msra.mxu0 0.0
    %956 = vmatprep.subr.mxu0 0.0
    %957 = vmatpush2.xpose.msra.mxu0 0.0
    %958 = vmatprep.subr.mxu0 0.0
    %959 = vmatpush2.xpose.msra.mxu0 0.0
    %960 = vmatprep.subr.mxu0 0.0
    %961 = vmatpush2.xpose.msra.mxu0 0.0
    %962 = vmatprep.subr.mxu0 0.0
    %963 = vmatpush2.xpose.msra.mxu0 0.0
    %964 = vmatprep.subr.mxu0 0.0
    %965 = vmatpush2.xpose.msra.mxu0 0.0
    %966 = vmatprep.subr.mxu0 0.0
    %967 = vmatpush2.xpose.msra.mxu0 0.0
    %968 = vmatprep.subr.mxu0 0.0
    %969 = vmatpush2.xpose.msra.mxu0 0.0
    %970 = vmatprep.subr.mxu0 0.0
    %971 = vmatpush2.xpose.msra.mxu0 0.0
    %972 = vmatprep.subr.mxu0 0.0
    %973 = vmatpush2.xpose.msra.mxu0 0.0
    %974 = vmatprep.subr.mxu0 0.0
    %975 = vmatpush2.xpose.msra.mxu0 0.0
    %976 = vmatprep.subr.mxu0 0.0
    %977 = vmatpush2.xpose.msra.mxu0 0.0
    %978 = vmatprep.subr.mxu0 0.0
    %979 = vmatpush2.xpose.msra.mxu0 0.0
    %980 = vmatprep.subr.mxu0 0.0
    %981 = vmatpush2.xpose.msra.mxu0 0.0
    %982 = vmatprep.subr.mxu0 0.0
    %983 = vmatpush2.xpose.msra.mxu0 0.0
    %984 = vmatprep.mubr.f32.mxu0 0.0
    %985 = vmatmul.mubr.f32.gmra.mxu0 %v916
    %v986 = vpop.f32.mrf.mxu0
    %v987 = vadd.f32 0.0, %v986
    %v988 = vpop.f32.mrf.mxu0
    %989 = vdwg.mxu0
    %v990 = vsel %vm176, %v909, -inf
    %991 = vmax.xlane.f32.xlu0 %v990
    %v992 = vpop.xlane.xlu0 %991
    %v993 = vsel %vm176, %v987, -inf
    %994 = vmax.xlane.f32.xlu0 %v993
    %v995 = vpop.xlane.xlu0 %994
    %v996 = vsub.f32 %v909, %v992
    %v997 = vsub.f32 %v987, %v995
    %v998 = vmul.f32 %v996, 1.442695
    %v999 = vpow.pop %v998
    %v1000 = vmul.f32 %v997, 1.442695
    %v1001 = vpow.pop %v1000
    %v1002 = vsel %vm176, %v999, 0.0
    %1003 = vadd.xlane.f32.xlu0 %v1002
    %v1004 = vpop.xlane.xlu0 %1003
    %v1005 = vsel %vm176, %v1001, 0.0
    %1006 = vadd.xlane.f32.xlu0 %v1005
    %v1007 = vpop.xlane.xlu0 %1006
    %v1008 = vrcp.pop %v1004
    %v1009 = vrcp.pop %v1007
    %v1010 = vmul.f32 %v999, %v1008
    %v1011 = vmul.f32 %v1001, %v1009
    %1012 = vrot.lane.b32.xlu0 %v163, 48
    %v1013 = vpop.permute.xlu0 %1012
    %v1016 = vsel %vm176, %v1010, 0
    %1018 = vmatprep.subr.mxu0 0.0
    %1019 = vmatpush1.msra.mxu0 0.0
    %1020 = vmatprep.subr.mxu0 0.0
    %1021 = vmatpush1.msra.mxu0 0.0
    %1022 = vmatprep.subr.mxu0 0.0
    %1023 = vmatpush1.msra.mxu0 0.0
    %1024 = vmatprep.subr.mxu0 0.0
    %1025 = vmatpush1.msra.mxu0 0.0
    %1026 = vmatprep.subr.mxu0 0.0
    %1027 = vmatpush1.msra.mxu0 0.0
    %1028 = vmatprep.subr.mxu0 0.0
    %1029 = vmatpush1.msra.mxu0 0.0
    %1030 = vmatprep.subr.mxu0 0.0
    %1031 = vmatpush1.msra.mxu0 0.0
    %1032 = vmatprep.subr.mxu0 0.0
    %1033 = vmatpush1.msra.mxu0 0.0
    %1034 = vmatprep.subr.mxu0 0.0
    %1035 = vmatpush1.msra.mxu0 0.0
    %1036 = vmatprep.subr.mxu0 0.0
    %1037 = vmatpush1.msra.mxu0 0.0
    %1038 = vmatprep.subr.mxu0 0.0
    %1039 = vmatpush1.msra.mxu0 0.0
    %1040 = vmatprep.subr.mxu0 0.0
    %1041 = vmatpush1.msra.mxu0 0.0
    %1042 = vmatprep.subr.mxu0 0.0
    %1043 = vmatpush1.msra.mxu0 0.0
    %1044 = vmatprep.subr.mxu0 0.0
    %1045 = vmatpush1.msra.mxu0 0.0
    %1046 = vmatprep.subr.mxu0 0.0
    %1047 = vmatpush1.msra.mxu0 0.0
    %1048 = vmatprep.subr.mxu0 0.0
    %1049 = vmatpush1.msra.mxu0 %v1013
    %1050 = vmatprep.subr.mxu0 0.0
    %1051 = vmatpush2.msra.mxu0 0.0
    %1052 = vmatprep.subr.mxu0 0.0
    %1053 = vmatpush2.msra.mxu0 0.0
    %1054 = vmatprep.subr.mxu0 0.0
    %1055 = vmatpush2.msra.mxu0 0.0
    %1056 = vmatprep.subr.mxu0 0.0
    %1057 = vmatpush2.msra.mxu0 0.0
    %1058 = vmatprep.subr.mxu0 0.0
    %1059 = vmatpush2.msra.mxu0 0.0
    %1060 = vmatprep.subr.mxu0 0.0
    %1061 = vmatpush2.msra.mxu0 0.0
    %1062 = vmatprep.subr.mxu0 0.0
    %1063 = vmatpush2.msra.mxu0 0.0
    %1064 = vmatprep.subr.mxu0 0.0
    %1065 = vmatpush2.msra.mxu0 0.0
    %1066 = vmatprep.subr.mxu0 0.0
    %1067 = vmatpush2.msra.mxu0 0.0
    %1068 = vmatprep.subr.mxu0 0.0
    %1069 = vmatpush2.msra.mxu0 0.0
    %1070 = vmatprep.subr.mxu0 0.0
    %1071 = vmatpush2.msra.mxu0 0.0
    %1072 = vmatprep.subr.mxu0 0.0
    %1073 = vmatpush2.msra.mxu0 0.0
    %1074 = vmatprep.subr.mxu0 0.0
    %1075 = vmatpush2.msra.mxu0 0.0
    %1076 = vmatprep.subr.mxu0 0.0
    %1077 = vmatpush2.msra.mxu0 0.0
    %1078 = vmatprep.subr.mxu0 0.0
    %1079 = vmatpush2.msra.mxu0 0.0
    %1080 = vmatprep.subr.mxu0 0.0
    %1081 = vmatpush2.msra.mxu0 0.0
    %1082 = vmatprep.mubr.f32.mxu0 0.0
    %1083 = vmatmul.mubr.f32.gmra.mxu0 %v1016
    %v1084 = vpop.f32.mrf.mxu0
    %v1085 = vadd.f32 0.0, %v1084
    %v1086 = vpop.f32.mrf.mxu0
    %1087 = vdwg.mxu0
    %1088 = vrot.lane.b32.xlu0 %v168, 48
    %v1089 = vpop.permute.xlu0 %1088
    %v1092 = vsel %vm176, %v1011, 0
    %1094 = vmatprep.subr.mxu0 0.0
    %1095 = vmatpush1.msra.mxu0 0.0
    %1096 = vmatprep.subr.mxu0 0.0
    %1097 = vmatpush1.msra.mxu0 0.0
    %1098 = vmatprep.subr.mxu0 0.0
    %1099 = vmatpush1.msra.mxu0 0.0
    %1100 = vmatprep.subr.mxu0 0.0
    %1101 = vmatpush1.msra.mxu0 0.0
    %1102 = vmatprep.subr.mxu0 0.0
    %1103 = vmatpush1.msra.mxu0 0.0
    %1104 = vmatprep.subr.mxu0 0.0
    %1105 = vmatpush1.msra.mxu0 0.0
    %1106 = vmatprep.subr.mxu0 0.0
    %1107 = vmatpush1.msra.mxu0 0.0
    %1108 = vmatprep.subr.mxu0 0.0
    %1109 = vmatpush1.msra.mxu0 0.0
    %1110 = vmatprep.subr.mxu0 0.0
    %1111 = vmatpush1.msra.mxu0 0.0
    %1112 = vmatprep.subr.mxu0 0.0
    %1113 = vmatpush1.msra.mxu0 0.0
    %1114 = vmatprep.subr.mxu0 0.0
    %1115 = vmatpush1.msra.mxu0 0.0
    %1116 = vmatprep.subr.mxu0 0.0
    %1117 = vmatpush1.msra.mxu0 0.0
    %1118 = vmatprep.subr.mxu0 0.0
    %1119 = vmatpush1.msra.mxu0 0.0
    %1120 = vmatprep.subr.mxu0 0.0
    %1121 = vmatpush1.msra.mxu0 0.0
    %1122 = vmatprep.subr.mxu0 0.0
    %1123 = vmatpush1.msra.mxu0 0.0
    %1124 = vmatprep.subr.mxu0 0.0
    %1125 = vmatpush1.msra.mxu0 %v1089
    %1126 = vmatprep.subr.mxu0 0.0
    %1127 = vmatpush2.msra.mxu0 0.0
    %1128 = vmatprep.subr.mxu0 0.0
    %1129 = vmatpush2.msra.mxu0 0.0
    %1130 = vmatprep.subr.mxu0 0.0
    %1131 = vmatpush2.msra.mxu0 0.0
    %1132 = vmatprep.subr.mxu0 0.0
    %1133 = vmatpush2.msra.mxu0 0.0
    %1134 = vmatprep.subr.mxu0 0.0
    %1135 = vmatpush2.msra.mxu0 0.0
    %1136 = vmatprep.subr.mxu0 0.0
    %1137 = vmatpush2.msra.mxu0 0.0
    %1138 = vmatprep.subr.mxu0 0.0
    %1139 = vmatpush2.msra.mxu0 0.0
    %1140 = vmatprep.subr.mxu0 0.0
    %1141 = vmatpush2.msra.mxu0 0.0
    %1142 = vmatprep.subr.mxu0 0.0
    %1143 = vmatpush2.msra.mxu0 0.0
    %1144 = vmatprep.subr.mxu0 0.0
    %1145 = vmatpush2.msra.mxu0 0.0
    %1146 = vmatprep.subr.mxu0 0.0
    %1147 = vmatpush2.msra.mxu0 0.0
    %1148 = vmatprep.subr.mxu0 0.0
    %1149 = vmatpush2.msra.mxu0 0.0
    %1150 = vmatprep.subr.mxu0 0.0
    %1151 = vmatpush2.msra.mxu0 0.0
    %1152 = vmatprep.subr.mxu0 0.0
    %1153 = vmatpush2.msra.mxu0 0.0
    %1154 = vmatprep.subr.mxu0 0.0
    %1155 = vmatpush2.msra.mxu0 0.0
    %1156 = vmatprep.subr.mxu0 0.0
    %1157 = vmatpush2.msra.mxu0 0.0
    %1158 = vmatprep.mubr.f32.mxu0 0.0
    %1159 = vmatmul.mubr.f32.gmra.mxu0 %v1092
    %v1160 = vpop.f32.mrf.mxu0
    %v1161 = vadd.f32 0.0, %v1160
    %v1162 = vpop.f32.mrf.mxu0
    %1163 = vdwg.mxu0
    %1164 = vrot.lane.b32.xlu0 %v171, 104
    %v1165 = vpop.permute.xlu0 %1164
    %1166 = vrot.lane.b32.xlu0 %v163, 72
    %v1167 = vpop.permute.xlu0 %1166
    %v1168 = vsel %vm176, %v1165, 0
    %v1170 = vsel %vm176, %v1167, 0
    %1172 = vmatprep.subr.mxu0 0.0
    %1173 = vmatpush1.xpose.msra.mxu0 0.0
    %1174 = vmatprep.subr.mxu0 0.0
    %1175 = vmatpush1.xpose.msra.mxu0 0.0
    %1176 = vmatprep.subr.mxu0 0.0
    %1177 = vmatpush1.xpose.msra.mxu0 0.0
    %1178 = vmatprep.subr.mxu0 0.0
    %1179 = vmatpush1.xpose.msra.mxu0 0.0
    %1180 = vmatprep.subr.mxu0 0.0
    %1181 = vmatpush1.xpose.msra.mxu0 0.0
    %1182 = vmatprep.subr.mxu0 0.0
    %1183 = vmatpush1.xpose.msra.mxu0 0.0
    %1184 = vmatprep.subr.mxu0 0.0
    %1185 = vmatpush1.xpose.msra.mxu0 0.0
    %1186 = vmatprep.subr.mxu0 0.0
    %1187 = vmatpush1.xpose.msra.mxu0 0.0
    %1188 = vmatprep.subr.mxu0 0.0
    %1189 = vmatpush1.xpose.msra.mxu0 0.0
    %1190 = vmatprep.subr.mxu0 0.0
    %1191 = vmatpush1.xpose.msra.mxu0 0.0
    %1192 = vmatprep.subr.mxu0 0.0
    %1193 = vmatpush1.xpose.msra.mxu0 0.0
    %1194 = vmatprep.subr.mxu0 0.0
    %1195 = vmatpush1.xpose.msra.mxu0 0.0
    %1196 = vmatprep.subr.mxu0 0.0
    %1197 = vmatpush1.xpose.msra.mxu0 0.0
    %1198 = vmatprep.subr.mxu0 0.0
    %1199 = vmatpush1.xpose.msra.mxu0 0.0
    %1200 = vmatprep.subr.mxu0 0.0
    %1201 = vmatpush1.xpose.msra.mxu0 0.0
    %1202 = vmatprep.subr.mxu0 0.0
    %1203 = vmatpush1.xpose.msra.mxu0 %v1170
    %1204 = vmatprep.subr.mxu0 0.0
    %1205 = vmatpush2.xpose.msra.mxu0 0.0
    %1206 = vmatprep.subr.mxu0 0.0
    %1207 = vmatpush2.xpose.msra.mxu0 0.0
    %1208 = vmatprep.subr.mxu0 0.0
    %1209 = vmatpush2.xpose.msra.mxu0 0.0
    %1210 = vmatprep.subr.mxu0 0.0
    %1211 = vmatpush2.xpose.msra.mxu0 0.0
    %1212 = vmatprep.subr.mxu0 0.0
    %1213 = vmatpush2.xpose.msra.mxu0 0.0
    %1214 = vmatprep.subr.mxu0 0.0
    %1215 = vmatpush2.xpose.msra.mxu0 0.0
    %1216 = vmatprep.subr.mxu0 0.0
    %1217 = vmatpush2.xpose.msra.mxu0 0.0
    %1218 = vmatprep.subr.mxu0 0.0
    %1219 = vmatpush2.xpose.msra.mxu0 0.0
    %1220 = vmatprep.subr.mxu0 0.0
    %1221 = vmatpush2.xpose.msra.mxu0 0.0
    %1222 = vmatprep.subr.mxu0 0.0
    %1223 = vmatpush2.xpose.msra.mxu0 0.0
    %1224 = vmatprep.subr.mxu0 0.0
    %1225 = vmatpush2.xpose.msra.mxu0 0.0
    %1226 = vmatprep.subr.mxu0 0.0
    %1227 = vmatpush2.xpose.msra.mxu0 0.0
    %1228 = vmatprep.subr.mxu0 0.0
    %1229 = vmatpush2.xpose.msra.mxu0 0.0
    %1230 = vmatprep.subr.mxu0 0.0
    %1231 = vmatpush2.xpose.msra.mxu0 0.0
    %1232 = vmatprep.subr.mxu0 0.0
    %1233 = vmatpush2.xpose.msra.mxu0 0.0
    %1234 = vmatprep.subr.mxu0 0.0
    %1235 = vmatpush2.xpose.msra.mxu0 0.0
    %1236 = vmatprep.mubr.f32.mxu0 0.0
    %1237 = vmatmul.mubr.f32.gmra.mxu0 %v1168
    %v1238 = vpop.f32.mrf.mxu0
    %v1239 = vadd.f32 0.0, %v1238
    %v1240 = vpop.f32.mrf.mxu0
    %1241 = vdwg.mxu0
    %1242 = vrot.lane.b32.xlu0 %v172, 104
    %v1243 = vpop.permute.xlu0 %1242
    %1244 = vrot.lane.b32.xlu0 %v168, 72
    %v1245 = vpop.permute.xlu0 %1244
    %v1246 = vsel %vm176, %v1243, 0
    %v1248 = vsel %vm176, %v1245, 0
    %1250 = vmatprep.subr.mxu0 0.0
    %1251 = vmatpush1.xpose.msra.mxu0 0.0
    %1252 = vmatprep.subr.mxu0 0.0
    %1253 = vmatpush1.xpose.msra.mxu0 0.0
    %1254 = vmatprep.subr.mxu0 0.0
    %1255 = vmatpush1.xpose.msra.mxu0 0.0
    %1256 = vmatprep.subr.mxu0 0.0
    %1257 = vmatpush1.xpose.msra.mxu0 0.0
    %1258 = vmatprep.subr.mxu0 0.0
    %1259 = vmatpush1.xpose.msra.mxu0 0.0
    %1260 = vmatprep.subr.mxu0 0.0
    %1261 = vmatpush1.xpose.msra.mxu0 0.0
    %1262 = vmatprep.subr.mxu0 0.0
    %1263 = vmatpush1.xpose.msra.mxu0 0.0
    %1264 = vmatprep.subr.mxu0 0.0
    %1265 = vmatpush1.xpose.msra.mxu0 0.0
    %1266 = vmatprep.subr.mxu0 0.0
    %1267 = vmatpush1.xpose.msra.mxu0 0.0
    %1268 = vmatprep.subr.mxu0 0.0
    %1269 = vmatpush1.xpose.msra.mxu0 0.0
    %1270 = vmatprep.subr.mxu0 0.0
    %1271 = vmatpush1.xpose.msra.mxu0 0.0
    %1272 = vmatprep.subr.mxu0 0.0
    %1273 = vmatpush1.xpose.msra.mxu0 0.0
    %1274 = vmatprep.subr.mxu0 0.0
    %1275 = vmatpush1.xpose.msra.mxu0 0.0
    %1276 = vmatprep.subr.mxu0 0.0
    %1277 = vmatpush1.xpose.msra.mxu0 0.0
    %1278 = vmatprep.subr.mxu0 0.0
    %1279 = vmatpush1.xpose.msra.mxu0 0.0
    %1280 = vmatprep.subr.mxu0 0.0
    %1281 = vmatpush1.xpose.msra.mxu0 %v1248
    %1282 = vmatprep.subr.mxu0 0.0
    %1283 = vmatpush2.xpose.msra.mxu0 0.0
    %1284 = vmatprep.subr.mxu0 0.0
    %1285 = vmatpush2.xpose.msra.mxu0 0.0
    %1286 = vmatprep.subr.mxu0 0.0
    %1287 = vmatpush2.xpose.msra.mxu0 0.0
    %1288 = vmatprep.subr.mxu0 0.0
    %1289 = vmatpush2.xpose.msra.mxu0 0.0
    %1290 = vmatprep.subr.mxu0 0.0
    %1291 = vmatpush2.xpose.msra.mxu0 0.0
    %1292 = vmatprep.subr.mxu0 0.0
    %1293 = vmatpush2.xpose.msra.mxu0 0.0
    %1294 = vmatprep.subr.mxu0 0.0
    %1295 = vmatpush2.xpose.msra.mxu0 0.0
    %1296 = vmatprep.subr.mxu0 0.0
    %1297 = vmatpush2.xpose.msra.mxu0 0.0
    %1298 = vmatprep.subr.mxu0 0.0
    %1299 = vmatpush2.xpose.msra.mxu0 0.0
    %1300 = vmatprep.subr.mxu0 0.0
    %1301 = vmatpush2.xpose.msra.mxu0 0.0
    %1302 = vmatprep.subr.mxu0 0.0
    %1303 = vmatpush2.xpose.msra.mxu0 0.0
    %1304 = vmatprep.subr.mxu0 0.0
    %1305 = vmatpush2.xpose.msra.mxu0 0.0
    %1306 = vmatprep.subr.mxu0 0.0
    %1307 = vmatpush2.xpose.msra.mxu0 0.0
    %1308 = vmatprep.subr.mxu0 0.0
    %1309 = vmatpush2.xpose.msra.mxu0 0.0
    %1310 = vmatprep.subr.mxu0 0.0
    %1311 = vmatpush2.xpose.msra.mxu0 0.0
    %1312 = vmatprep.subr.mxu0 0.0
    %1313 = vmatpush2.xpose.msra.mxu0 0.0
    %1314 = vmatprep.mubr.f32.mxu0 0.0
    %1315 = vmatmul.mubr.f32.gmra.mxu0 %v1246
    %v1316 = vpop.f32.mrf.mxu0
    %v1317 = vadd.f32 0.0, %v1316
    %v1318 = vpop.f32.mrf.mxu0
    %1319 = vdwg.mxu0
    %v1320 = vsel %vm176, %v1239, -inf
    %1321 = vmax.xlane.f32.xlu0 %v1320
    %v1322 = vpop.xlane.xlu0 %1321
    %v1323 = vsel %vm176, %v1317, -inf
    %1324 = vmax.xlane.f32.xlu0 %v1323
    %v1325 = vpop.xlane.xlu0 %1324
    %v1326 = vsub.f32 %v1239, %v1322
    %v1327 = vsub.f32 %v1317, %v1325
    %v1328 = vmul.f32 %v1326, 1.442695
    %v1329 = vpow.pop %v1328
    %v1330 = vmul.f32 %v1327, 1.442695
    %v1331 = vpow.pop %v1330
    %v1332 = vsel %vm176, %v1329, 0.0
    %1333 = vadd.xlane.f32.xlu0 %v1332
    %v1334 = vpop.xlane.xlu0 %1333
    %v1335 = vsel %vm176, %v1331, 0.0
    %1336 = vadd.xlane.f32.xlu0 %v1335
    %v1337 = vpop.xlane.xlu0 %1336
    %v1338 = vrcp.pop %v1334
    %v1339 = vrcp.pop %v1337
    %v1340 = vmul.f32 %v1329, %v1338
    %v1341 = vmul.f32 %v1331, %v1339
    %1342 = vrot.lane.b32.xlu0 %v163, 40
    %v1343 = vpop.permute.xlu0 %1342
    %v1346 = vsel %vm176, %v1340, 0
    %1348 = vmatprep.subr.mxu0 0.0
    %1349 = vmatpush1.msra.mxu0 0.0
    %1350 = vmatprep.subr.mxu0 0.0
    %1351 = vmatpush1.msra.mxu0 0.0
    %1352 = vmatprep.subr.mxu0 0.0
    %1353 = vmatpush1.msra.mxu0 0.0
    %1354 = vmatprep.subr.mxu0 0.0
    %1355 = vmatpush1.msra.mxu0 0.0
    %1356 = vmatprep.subr.mxu0 0.0
    %1357 = vmatpush1.msra.mxu0 0.0
    %1358 = vmatprep.subr.mxu0 0.0
    %1359 = vmatpush1.msra.mxu0 0.0
    %1360 = vmatprep.subr.mxu0 0.0
    %1361 = vmatpush1.msra.mxu0 0.0
    %1362 = vmatprep.subr.mxu0 0.0
    %1363 = vmatpush1.msra.mxu0 0.0
    %1364 = vmatprep.subr.mxu0 0.0
    %1365 = vmatpush1.msra.mxu0 0.0
    %1366 = vmatprep.subr.mxu0 0.0
    %1367 = vmatpush1.msra.mxu0 0.0
    %1368 = vmatprep.subr.mxu0 0.0
    %1369 = vmatpush1.msra.mxu0 0.0
    %1370 = vmatprep.subr.mxu0 0.0
    %1371 = vmatpush1.msra.mxu0 0.0
    %1372 = vmatprep.subr.mxu0 0.0
    %1373 = vmatpush1.msra.mxu0 0.0
    %1374 = vmatprep.subr.mxu0 0.0
    %1375 = vmatpush1.msra.mxu0 0.0
    %1376 = vmatprep.subr.mxu0 0.0
    %1377 = vmatpush1.msra.mxu0 0.0
    %1378 = vmatprep.subr.mxu0 0.0
    %1379 = vmatpush1.msra.mxu0 %v1343
    %1380 = vmatprep.subr.mxu0 0.0
    %1381 = vmatpush2.msra.mxu0 0.0
    %1382 = vmatprep.subr.mxu0 0.0
    %1383 = vmatpush2.msra.mxu0 0.0
    %1384 = vmatprep.subr.mxu0 0.0
    %1385 = vmatpush2.msra.mxu0 0.0
    %1386 = vmatprep.subr.mxu0 0.0
    %1387 = vmatpush2.msra.mxu0 0.0
    %1388 = vmatprep.subr.mxu0 0.0
    %1389 = vmatpush2.msra.mxu0 0.0
    %1390 = vmatprep.subr.mxu0 0.0
    %1391 = vmatpush2.msra.mxu0 0.0
    %1392 = vmatprep.subr.mxu0 0.0
    %1393 = vmatpush2.msra.mxu0 0.0
    %1394 = vmatprep.subr.mxu0 0.0
    %1395 = vmatpush2.msra.mxu0 0.0
    %1396 = vmatprep.subr.mxu0 0.0
    %1397 = vmatpush2.msra.mxu0 0.0
    %1398 = vmatprep.subr.mxu0 0.0
    %1399 = vmatpush2.msra.mxu0 0.0
    %1400 = vmatprep.subr.mxu0 0.0
    %1401 = vmatpush2.msra.mxu0 0.0
    %1402 = vmatprep.subr.mxu0 0.0
    %1403 = vmatpush2.msra.mxu0 0.0
    %1404 = vmatprep.subr.mxu0 0.0
    %1405 = vmatpush2.msra.mxu0 0.0
    %1406 = vmatprep.subr.mxu0 0.0
    %1407 = vmatpush2.msra.mxu0 0.0
    %1408 = vmatprep.subr.mxu0 0.0
    %1409 = vmatpush2.msra.mxu0 0.0
    %1410 = vmatprep.subr.mxu0 0.0
    %1411 = vmatpush2.msra.mxu0 0.0
    %1412 = vmatprep.mubr.f32.mxu0 0.0
    %1413 = vmatmul.mubr.f32.gmra.mxu0 %v1346
    %v1414 = vpop.f32.mrf.mxu0
    %v1415 = vadd.f32 0.0, %v1414
    %v1416 = vpop.f32.mrf.mxu0
    %1417 = vdwg.mxu0
    %1418 = vrot.lane.b32.xlu0 %v168, 40
    %v1419 = vpop.permute.xlu0 %1418
    %v1422 = vsel %vm176, %v1341, 0
    %1424 = vmatprep.subr.mxu0 0.0
    %1425 = vmatpush1.msra.mxu0 0.0
    %1426 = vmatprep.subr.mxu0 0.0
    %1427 = vmatpush1.msra.mxu0 0.0
    %1428 = vmatprep.subr.mxu0 0.0
    %1429 = vmatpush1.msra.mxu0 0.0
    %1430 = vmatprep.subr.mxu0 0.0
    %1431 = vmatpush1.msra.mxu0 0.0
    %1432 = vmatprep.subr.mxu0 0.0
    %1433 = vmatpush1.msra.mxu0 0.0
    %1434 = vmatprep.subr.mxu0 0.0
    %1435 = vmatpush1.msra.mxu0 0.0
    %1436 = vmatprep.subr.mxu0 0.0
    %1437 = vmatpush1.msra.mxu0 0.0
    %1438 = vmatprep.subr.mxu0 0.0
    %1439 = vmatpush1.msra.mxu0 0.0
    %1440 = vmatprep.subr.mxu0 0.0
    %1441 = vmatpush1.msra.mxu0 0.0
    %1442 = vmatprep.subr.mxu0 0.0
    %1443 = vmatpush1.msra.mxu0 0.0
    %1444 = vmatprep.subr.mxu0 0.0
    %1445 = vmatpush1.msra.mxu0 0.0
    %1446 = vmatprep.subr.mxu0 0.0
    %1447 = vmatpush1.msra.mxu0 0.0
    %1448 = vmatprep.subr.mxu0 0.0
    %1449 = vmatpush1.msra.mxu0 0.0
    %1450 = vmatprep.subr.mxu0 0.0
    %1451 = vmatpush1.msra.mxu0 0.0
    %1452 = vmatprep.subr.mxu0 0.0
    %1453 = vmatpush1.msra.mxu0 0.0
    %1454 = vmatprep.subr.mxu0 0.0
    %1455 = vmatpush1.msra.mxu0 %v1419
    %1456 = vmatprep.subr.mxu0 0.0
    %1457 = vmatpush2.msra.mxu0 0.0
    %1458 = vmatprep.subr.mxu0 0.0
    %1459 = vmatpush2.msra.mxu0 0.0
    %1460 = vmatprep.subr.mxu0 0.0
    %1461 = vmatpush2.msra.mxu0 0.0
    %1462 = vmatprep.subr.mxu0 0.0
    %1463 = vmatpush2.msra.mxu0 0.0
    %1464 = vmatprep.subr.mxu0 0.0
    %1465 = vmatpush2.msra.mxu0 0.0
    %1466 = vmatprep.subr.mxu0 0.0
    %1467 = vmatpush2.msra.mxu0 0.0
    %1468 = vmatprep.subr.mxu0 0.0
    %1469 = vmatpush2.msra.mxu0 0.0
    %1470 = vmatprep.subr.mxu0 0.0
    %1471 = vmatpush2.msra.mxu0 0.0
    %1472 = vmatprep.subr.mxu0 0.0
    %1473 = vmatpush2.msra.mxu0 0.0
    %1474 = vmatprep.subr.mxu0 0.0
    %1475 = vmatpush2.msra.mxu0 0.0
    %1476 = vmatprep.subr.mxu0 0.0
    %1477 = vmatpush2.msra.mxu0 0.0
    %1478 = vmatprep.subr.mxu0 0.0
    %1479 = vmatpush2.msra.mxu0 0.0
    %1480 = vmatprep.subr.mxu0 0.0
    %1481 = vmatpush2.msra.mxu0 0.0
    %1482 = vmatprep.subr.mxu0 0.0
    %1483 = vmatpush2.msra.mxu0 0.0
    %1484 = vmatprep.subr.mxu0 0.0
    %1485 = vmatpush2.msra.mxu0 0.0
    %1486 = vmatprep.subr.mxu0 0.0
    %1487 = vmatpush2.msra.mxu0 0.0
    %1488 = vmatprep.mubr.f32.mxu0 0.0
    %1489 = vmatmul.mubr.f32.gmra.mxu0 %v1422
    %v1490 = vpop.f32.mrf.mxu0
    %v1491 = vadd.f32 0.0, %v1490
    %v1492 = vpop.f32.mrf.mxu0
    %1493 = vdwg.mxu0
    %1496 = vrot.lane.b32.xlu0 %v755, 8
    %v1497 = vpop.permute.xlu0 %1496
    %1498 = vrot.lane.b32.xlu0 %v831, 8
    %v1499 = vpop.permute.xlu0 %1498
    %1504 = vrot.lane.b32.xlu0 %v1085, 16
    %v1505 = vpop.permute.xlu0 %1504
    %1506 = vrot.lane.b32.xlu0 %v1161, 16
    %v1507 = vpop.permute.xlu0 %1506
    %1512 = vrot.lane.b32.xlu0 %v1415, 24
    %v1513 = vpop.permute.xlu0 %1512
    %1514 = vrot.lane.b32.xlu0 %v1491, 24
    %v1515 = vpop.permute.xlu0 %1514
    %v1518 = vsel %vm176, %v425, %v1497
    %v1519 = vsel %vm176, %v501, %v1499
    %vm1520 = vcmask 130048
    %v1521 = vsel %vm1520, %v1518, %v1505
    %v1522 = vsel %vm1520, %v1519, %v1507
    %vm1523 = vcmask 195584
    %v1524 = vsel %vm1523, %v1521, %v1513
    %v1525 = vsel %vm1523, %v1522, %v1515
    %v1526 = vld [vmem:[%s2] sm:$0xff]
    %v1527 = vld [vmem:[%s2 + $0x8] sm:$0xff]
    %v1528 = vld [vmem:[%s2 + $0x10] sm:$0xff]
    %v1529 = vld [vmem:[%s2 + $0x18] sm:$0xff]
    %v1531 = vsel %vm50, %v1524, 0
    %v1534 = vsel %vm50, %v1525, 0
    %1536 = vmatprep.subr.mxu0 0.0
    %1537 = vmatpush1.msra.mxu0 0.0
    %1538 = vmatprep.subr.mxu0 0.0
    %1539 = vmatpush1.msra.mxu0 0.0
    %1540 = vmatprep.subr.mxu0 0.0
    %1541 = vmatpush1.msra.mxu0 0.0
    %1542 = vmatprep.subr.mxu0 0.0
    %1543 = vmatpush1.msra.mxu0 0.0
    %1544 = vmatprep.subr.mxu0 0.0
    %1545 = vmatpush1.msra.mxu0 0.0
    %1546 = vmatprep.subr.mxu0 0.0
    %1547 = vmatpush1.msra.mxu0 0.0
    %1548 = vmatprep.subr.mxu0 0.0
    %1549 = vmatpush1.msra.mxu0 0.0
    %1550 = vmatprep.subr.mxu0 0.0
    %1551 = vmatpush1.msra.mxu0 0.0
    %1552 = vmatprep.subr.mxu0 0.0
    %1553 = vmatpush1.msra.mxu0 0.0
    %1554 = vmatprep.subr.mxu0 0.0
    %1555 = vmatpush1.msra.mxu0 0.0
    %1556 = vmatprep.subr.mxu0 0.0
    %1557 = vmatpush1.msra.mxu0 0.0
    %1558 = vmatprep.subr.mxu0 0.0
    %1559 = vmatpush1.msra.mxu0 0.0
    %1560 = vmatprep.subr.mxu0 0.0
    %1561 = vmatpush1.msra.mxu0 %v1529
    %1562 = vmatprep.subr.mxu0 0.0
    %1563 = vmatpush1.msra.mxu0 %v1528
    %1564 = vmatprep.subr.mxu0 0.0
    %1565 = vmatpush1.msra.mxu0 %v1527
    %1566 = vmatprep.subr.mxu0 0.0
    %1567 = vmatpush1.msra.mxu0 %v1526
    %1568 = vmatprep.subr.mxu0 0.0
    %1569 = vmatpush2.msra.mxu0 0.0
    %1570 = vmatprep.subr.mxu0 0.0
    %1571 = vmatpush2.msra.mxu0 0.0
    %1572 = vmatprep.subr.mxu0 0.0
    %1573 = vmatpush2.msra.mxu0 0.0
    %1574 = vmatprep.subr.mxu0 0.0
    %1575 = vmatpush2.msra.mxu0 0.0
    %1576 = vmatprep.subr.mxu0 0.0
    %1577 = vmatpush2.msra.mxu0 0.0
    %1578 = vmatprep.subr.mxu0 0.0
    %1579 = vmatpush2.msra.mxu0 0.0
    %1580 = vmatprep.subr.mxu0 0.0
    %1581 = vmatpush2.msra.mxu0 0.0
    %1582 = vmatprep.subr.mxu0 0.0
    %1583 = vmatpush2.msra.mxu0 0.0
    %1584 = vmatprep.subr.mxu0 0.0
    %1585 = vmatpush2.msra.mxu0 0.0
    %1586 = vmatprep.subr.mxu0 0.0
    %1587 = vmatpush2.msra.mxu0 0.0
    %1588 = vmatprep.subr.mxu0 0.0
    %1589 = vmatpush2.msra.mxu0 0.0
    %1590 = vmatprep.subr.mxu0 0.0
    %1591 = vmatpush2.msra.mxu0 0.0
    %1592 = vmatprep.subr.mxu0 0.0
    %1593 = vmatpush2.msra.mxu0 0.0
    %1594 = vmatprep.subr.mxu0 0.0
    %1595 = vmatpush2.msra.mxu0 0.0
    %1596 = vmatprep.subr.mxu0 0.0
    %1597 = vmatpush2.msra.mxu0 0.0
    %1598 = vmatprep.subr.mxu0 0.0
    %1599 = vmatpush2.msra.mxu0 0.0
    %1600 = vmatprep.mubr.f32.mxu0 0.0
    %1601 = vmatmul.mubr.f32.gmra.mxu0 %v1531
    %v1602 = vpop.f32.mrf.mxu0
    %v1603 = vadd.f32 0.0, %v1602
    %v1604 = vpop.f32.mrf.mxu0
    %1605 = vmatprep.mubr.f32.mxu0 0.0
    %1606 = vmatmul.mubr.f32.gmra.mxu0 %v1534
    %v1607 = vpop.f32.mrf.mxu0
    %v1608 = vadd.f32 0.0, %v1607
    %v1609 = vpop.f32.mrf.mxu0
    %1610 = vdwg.mxu0
    %v1611 = vld [vmem:[%s4] sm:$0x1]
    %v1612 = vsel %vm50, %v1603, 0.0
    %1613 = vadd.xlane.f32.xlu0 %v1612
    %v1614 = vpop.xlane.xlu0 %1613
    %v1615 = vsel %vm50, %v1608, 0.0
    %1616 = vadd.xlane.f32.xlu0 %v1615
    %v1617 = vpop.xlane.xlu0 %1616
    %v1618 = vmul.f32 %v1614, %v57
    %v1619 = vmul.f32 %v1617, %v57
    %v1620 = vsub.f32 %v1603, %v1618
    %v1621 = vsub.f32 %v1608, %v1619
    %v1622 = vmul.f32 %v1620, %v1620
    %v1623 = vmul.f32 %v1621, %v1621
    %v1624 = vsel %vm50, %v1622, 0.0
    %1625 = vadd.xlane.f32.xlu0 %v1624
    %v1626 = vpop.xlane.xlu0 %1625
    %v1627 = vsel %vm50, %v1623, 0.0
    %1628 = vadd.xlane.f32.xlu0 %v1627
    %v1629 = vpop.xlane.xlu0 %1628
    %v1630 = vmul.f32 %v1626, %v57
    %v1631 = vmul.f32 %v1629, %v57
    %v1632 = vadd.f32 %v1630, 1e-05
    %v1633 = vadd.f32 %v1631, 1e-05
    %v1634 = vrsqrt.pop %v1632
    %v1635 = vrsqrt.pop %v1633
    %v1636 = vmul.f32 %v1620, %v1634
    %v1637 = vmul.f32 %v1621, %v1635
    %v1639 = vlaneseq
    %v1640 = vshrl.u32 %v1639, 7
    %v1641 = vsub.s32 0, %v1640
    %v1642 = vrot.slane %v1611, %v1641
    %v1644 = vmul.f32 %v1636, %v1642
    %v1645 = vmul.f32 %v1637, %v1642
    %v1646 = vadd.f32 %v47, %v1644
    %v1647 = vadd.f32 %v48, %v1645
    %v1648 = vld [vmem:[%s5] sm:$0x1]
    %v1649 = vsel %vm50, %v1646, 0.0
    %1650 = vadd.xlane.f32.xlu0 %v1649
    %v1651 = vpop.xlane.xlu0 %1650
    %v1652 = vsel %vm50, %v1647, 0.0
    %1653 = vadd.xlane.f32.xlu0 %v1652
    %v1654 = vpop.xlane.xlu0 %1653
    %v1655 = vmul.f32 %v1651, %v57
    %v1656 = vmul.f32 %v1654, %v57
    %v1657 = vsub.f32 %v1646, %v1655
    %v1658 = vsub.f32 %v1647, %v1656
    %v1659 = vmul.f32 %v1657, %v1657
    %v1660 = vmul.f32 %v1658, %v1658
    %v1661 = vsel %vm50, %v1659, 0.0
    %1662 = vadd.xlane.f32.xlu0 %v1661
    %v1663 = vpop.xlane.xlu0 %1662
    %v1664 = vsel %vm50, %v1660, 0.0
    %1665 = vadd.xlane.f32.xlu0 %v1664
    %v1666 = vpop.xlane.xlu0 %1665
    %v1667 = vmul.f32 %v1663, %v57
    %v1668 = vmul.f32 %v1666, %v57
    %v1669 = vadd.f32 %v1667, 1e-05
    %v1670 = vadd.f32 %v1668, 1e-05
    %v1671 = vrsqrt.pop %v1669
    %v1672 = vrsqrt.pop %v1670
    %v1673 = vmul.f32 %v1657, %v1671
    %v1674 = vmul.f32 %v1658, %v1672
    %v1676 = vlaneseq
    %v1677 = vshrl.u32 %v1676, 7
    %v1678 = vsub.s32 0, %v1677
    %v1679 = vrot.slane %v1648, %v1678
    %v1681 = vmul.f32 %v1673, %v1679
    %v1682 = vmul.f32 %v1674, %v1679
    %v1683 = vld [vmem:[%s6] sm:$0xff]
    %v1684 = vld [vmem:[%s6 + $0x8] sm:$0xff]
    %v1685 = vld [vmem:[%s6 + $0x10] sm:$0xff]
    %v1686 = vld [vmem:[%s6 + $0x18] sm:$0xff]
    %v1688 = vsel %vm50, %v1681, 0
    %v1691 = vsel %vm50, %v1682, 0
    %1693 = vmatprep.subr.mxu0 0.0
    %1694 = vmatpush1.msra.mxu0 0.0
    %1695 = vmatprep.subr.mxu0 0.0
    %1696 = vmatpush1.msra.mxu0 0.0
    %1697 = vmatprep.subr.mxu0 0.0
    %1698 = vmatpush1.msra.mxu0 0.0
    %1699 = vmatprep.subr.mxu0 0.0
    %1700 = vmatpush1.msra.mxu0 0.0
    %1701 = vmatprep.subr.mxu0 0.0
    %1702 = vmatpush1.msra.mxu0 0.0
    %1703 = vmatprep.subr.mxu0 0.0
    %1704 = vmatpush1.msra.mxu0 0.0
    %1705 = vmatprep.subr.mxu0 0.0
    %1706 = vmatpush1.msra.mxu0 0.0
    %1707 = vmatprep.subr.mxu0 0.0
    %1708 = vmatpush1.msra.mxu0 0.0
    %1709 = vmatprep.subr.mxu0 0.0
    %1710 = vmatpush1.msra.mxu0 0.0
    %1711 = vmatprep.subr.mxu0 0.0
    %1712 = vmatpush1.msra.mxu0 0.0
    %1713 = vmatprep.subr.mxu0 0.0
    %1714 = vmatpush1.msra.mxu0 0.0
    %1715 = vmatprep.subr.mxu0 0.0
    %1716 = vmatpush1.msra.mxu0 0.0
    %1717 = vmatprep.subr.mxu0 0.0
    %1718 = vmatpush1.msra.mxu0 %v1686
    %1719 = vmatprep.subr.mxu0 0.0
    %1720 = vmatpush1.msra.mxu0 %v1685
    %1721 = vmatprep.subr.mxu0 0.0
    %1722 = vmatpush1.msra.mxu0 %v1684
    %1723 = vmatprep.subr.mxu0 0.0
    %1724 = vmatpush1.msra.mxu0 %v1683
    %1725 = vmatprep.subr.mxu0 0.0
    %1726 = vmatpush2.msra.mxu0 0.0
    %1727 = vmatprep.subr.mxu0 0.0
    %1728 = vmatpush2.msra.mxu0 0.0
    %1729 = vmatprep.subr.mxu0 0.0
    %1730 = vmatpush2.msra.mxu0 0.0
    %1731 = vmatprep.subr.mxu0 0.0
    %1732 = vmatpush2.msra.mxu0 0.0
    %1733 = vmatprep.subr.mxu0 0.0
    %1734 = vmatpush2.msra.mxu0 0.0
    %1735 = vmatprep.subr.mxu0 0.0
    %1736 = vmatpush2.msra.mxu0 0.0
    %1737 = vmatprep.subr.mxu0 0.0
    %1738 = vmatpush2.msra.mxu0 0.0
    %1739 = vmatprep.subr.mxu0 0.0
    %1740 = vmatpush2.msra.mxu0 0.0
    %1741 = vmatprep.subr.mxu0 0.0
    %1742 = vmatpush2.msra.mxu0 0.0
    %1743 = vmatprep.subr.mxu0 0.0
    %1744 = vmatpush2.msra.mxu0 0.0
    %1745 = vmatprep.subr.mxu0 0.0
    %1746 = vmatpush2.msra.mxu0 0.0
    %1747 = vmatprep.subr.mxu0 0.0
    %1748 = vmatpush2.msra.mxu0 0.0
    %1749 = vmatprep.subr.mxu0 0.0
    %1750 = vmatpush2.msra.mxu0 0.0
    %1751 = vmatprep.subr.mxu0 0.0
    %1752 = vmatpush2.msra.mxu0 0.0
    %1753 = vmatprep.subr.mxu0 0.0
    %1754 = vmatpush2.msra.mxu0 0.0
    %1755 = vmatprep.subr.mxu0 0.0
    %1756 = vmatpush2.msra.mxu0 0.0
    %1757 = vmatprep.mubr.f32.mxu0 0.0
    %1758 = vmatmul.mubr.f32.gmra.mxu0 %v1688
    %v1759 = vpop.f32.mrf.mxu0
    %v1760 = vadd.f32 0.0, %v1759
    %v1761 = vpop.f32.mrf.mxu0
    %1762 = vmatprep.mubr.f32.mxu0 0.0
    %1763 = vmatmul.mubr.f32.gmra.mxu0 %v1691
    %v1764 = vpop.f32.mrf.mxu0
    %v1765 = vadd.f32 0.0, %v1764
    %v1766 = vpop.f32.mrf.mxu0
    %1767 = vdwg.mxu0
    %v1768 = vmul.f32 %v1760, 0.70710677
    %v1769 = vmul.f32 %v1765, 0.70710677
    %v1770 = vand.u32 2147483647, %v1768
    %v1771 = vand.u32 2147483647, %v1769
    %v1772 = vmul.f32 %v1770, 0.3275911
    %v1773 = vmul.f32 %v1771, 0.3275911
    %v1774 = vadd.f32 %v1772, 1.0
    %v1775 = vadd.f32 %v1773, 1.0
    %v1776 = vrcp.pop %v1774
    %v1777 = vmul.f32 1.0, %v1776
    %v1778 = vrcp.pop %v1775
    %v1779 = vmul.f32 1.0, %v1778
    %v1780 = vmul.f32 %v1777, 1.0614054
    %v1781 = vmul.f32 %v1779, 1.0614054
    %v1782 = vsub.f32 %v1780, 1.4531521
    %v1783 = vsub.f32 %v1781, 1.4531521
    %v1784 = vmul.f32 %v1782, %v1777
    %v1785 = vmul.f32 %v1783, %v1779
    %v1786 = vadd.f32 %v1784, 1.4214138
    %v1787 = vadd.f32 %v1785, 1.4214138
    %v1788 = vmul.f32 %v1786, %v1777
    %v1789 = vmul.f32 %v1787, %v1779
    %v1790 = vsub.f32 %v1788, 0.28449672
    %v1791 = vsub.f32 %v1789, 0.28449672
    %v1792 = vmul.f32 %v1790, %v1777
    %v1793 = vmul.f32 %v1791, %v1779
    %v1794 = vadd.f32 %v1792, 0.2548296
    %v1795 = vadd.f32 %v1793, 0.2548296
    %v1796 = vmul.f32 %v1794, %v1777
    %v1797 = vmul.f32 %v1795, %v1779
    %v1798 = vsub.f32 0.0, %v1770
    %v1799 = vsub.f32 0.0, %v1771
    %v1800 = vmul.f32 %v1798, %v1770
    %v1801 = vmul.f32 %v1799, %v1771
    %v1802 = vmul.f32 %v1800, 1.442695
    %v1803 = vpow.pop %v1802
    %v1804 = vmul.f32 %v1801, 1.442695
    %v1805 = vpow.pop %v1804
    %v1806 = vmul.f32 %v1796, %v1803
    %v1807 = vmul.f32 %v1797, %v1805
    %v1808 = vsub.f32 1.0, %v1806
    %v1809 = vsub.f32 1.0, %v1807
    %vm1810 = vcmp.ge.f32.partialorder %v1768, 0.0
    %vm1811 = vcmp.ge.f32.partialorder %v1769, 0.0
    %v1812 = vsub.f32 0.0, %v1808
    %v1813 = vsub.f32 0.0, %v1809
    %v1814 = vsel %vm1810, %v1808, %v1812
    %v1815 = vsel %vm1811, %v1809, %v1813
    %v1816 = vmul.f32 %v1760, 0.5
    %v1817 = vmul.f32 %v1765, 0.5
    %v1818 = vadd.f32 %v1814, 1.0
    %v1819 = vadd.f32 %v1815, 1.0
    %v1820 = vmul.f32 %v1816, %v1818
    %v1821 = vmul.f32 %v1817, %v1819
    %1824 = vrot.lane.b32.xlu0 %v1760, 64
    %v1825 = vpop.permute.xlu0 %1824
    %1826 = vrot.lane.b32.xlu0 %v1765, 64
    %v1827 = vpop.permute.xlu0 %1826
    %v1830 = vmul.f32 %v1820, %v1825
    %v1831 = vmul.f32 %v1821, %v1827
    %v1832 = vld [vmem:[%s7] sm:$0x1]
    %vm1833 = vcmask 523264
    %v1834 = vsel %vm1833, %v1830, 0.0
    %1835 = vadd.xlane.f32.xlu0 %v1834
    %v1836 = vpop.xlane.xlu0 %1835
    %v1837 = vsel %vm1833, %v1831, 0.0
    %1838 = vadd.xlane.f32.xlu0 %v1837
    %v1839 = vpop.xlane.xlu0 %1838
    %v1840 = vrcp.pop 64.0
    %v1841 = vmul.f32 %v1836, %v1840
    %v1842 = vmul.f32 %v1839, %v1840
    %v1843 = vsub.f32 %v1830, %v1841
    %v1844 = vsub.f32 %v1831, %v1842
    %v1845 = vmul.f32 %v1843, %v1843
    %v1846 = vmul.f32 %v1844, %v1844
    %v1847 = vsel %vm1833, %v1845, 0.0
    %1848 = vadd.xlane.f32.xlu0 %v1847
    %v1849 = vpop.xlane.xlu0 %1848
    %v1850 = vsel %vm1833, %v1846, 0.0
    %1851 = vadd.xlane.f32.xlu0 %v1850
    %v1852 = vpop.xlane.xlu0 %1851
    %v1853 = vmul.f32 %v1849, %v1840
    %v1854 = vmul.f32 %v1852, %v1840
    %v1855 = vadd.f32 %v1853, 1e-05
    %v1856 = vadd.f32 %v1854, 1e-05
    %v1857 = vrsqrt.pop %v1855
    %v1858 = vrsqrt.pop %v1856
    %v1859 = vmul.f32 %v1843, %v1857
    %v1860 = vmul.f32 %v1844, %v1858
    %v1862 = vlaneseq
    %v1863 = vshrl.u32 %v1862, 7
    %v1864 = vsub.s32 0, %v1863
    %v1865 = vrot.slane %v1832, %v1864
    %v1867 = vmul.f32 %v1859, %v1865
    %v1868 = vmul.f32 %v1860, %v1865
    %v1869 = vld [vmem:[%s8] sm:$0xff]
    %v1870 = vld [vmem:[%s8 + $0x8] sm:$0xff]
    %v1871 = vld [vmem:[%s8 + $0x10] sm:$0xff]
    %v1872 = vld [vmem:[%s8 + $0x18] sm:$0xff]
    %v1873 = vld [vmem:[%s8 + $0x20] sm:$0xff]
    %v1874 = vld [vmem:[%s8 + $0x28] sm:$0xff]
    %v1875 = vld [vmem:[%s8 + $0x30] sm:$0xff]
    %v1876 = vld [vmem:[%s8 + $0x38] sm:$0xff]
    %v1878 = vsel %vm1833, %v1867, 0
    %v1881 = vsel %vm1833, %v1868, 0
    %1883 = vmatprep.subr.mxu0 0.0
    %1884 = vmatpush1.msra.mxu0 0.0
    %1885 = vmatprep.subr.mxu0 0.0
    %1886 = vmatpush1.msra.mxu0 0.0
    %1887 = vmatprep.subr.mxu0 0.0
    %1888 = vmatpush1.msra.mxu0 0.0
    %1889 = vmatprep.subr.mxu0 0.0
    %1890 = vmatpush1.msra.mxu0 0.0
    %1891 = vmatprep.subr.mxu0 0.0
    %1892 = vmatpush1.msra.mxu0 0.0
    %1893 = vmatprep.subr.mxu0 0.0
    %1894 = vmatpush1.msra.mxu0 0.0
    %1895 = vmatprep.subr.mxu0 0.0
    %1896 = vmatpush1.msra.mxu0 0.0
    %1897 = vmatprep.subr.mxu0 0.0
    %1898 = vmatpush1.msra.mxu0 0.0
    %1899 = vmatprep.subr.mxu0 0.0
    %1900 = vmatpush1.msra.mxu0 %v1876
    %1901 = vmatprep.subr.mxu0 0.0
    %1902 = vmatpush1.msra.mxu0 %v1875
    %1903 = vmatprep.subr.mxu0 0.0
    %1904 = vmatpush1.msra.mxu0 %v1874
    %1905 = vmatprep.subr.mxu0 0.0
    %1906 = vmatpush1.msra.mxu0 %v1873
    %1907 = vmatprep.subr.mxu0 0.0
    %1908 = vmatpush1.msra.mxu0 %v1872
    %1909 = vmatprep.subr.mxu0 0.0
    %1910 = vmatpush1.msra.mxu0 %v1871
    %1911 = vmatprep.subr.mxu0 0.0
    %1912 = vmatpush1.msra.mxu0 %v1870
    %1913 = vmatprep.subr.mxu0 0.0
    %1914 = vmatpush1.msra.mxu0 %v1869
    %1915 = vmatprep.subr.mxu0 0.0
    %1916 = vmatpush2.msra.mxu0 0.0
    %1917 = vmatprep.subr.mxu0 0.0
    %1918 = vmatpush2.msra.mxu0 0.0
    %1919 = vmatprep.subr.mxu0 0.0
    %1920 = vmatpush2.msra.mxu0 0.0
    %1921 = vmatprep.subr.mxu0 0.0
    %1922 = vmatpush2.msra.mxu0 0.0
    %1923 = vmatprep.subr.mxu0 0.0
    %1924 = vmatpush2.msra.mxu0 0.0
    %1925 = vmatprep.subr.mxu0 0.0
    %1926 = vmatpush2.msra.mxu0 0.0
    %1927 = vmatprep.subr.mxu0 0.0
    %1928 = vmatpush2.msra.mxu0 0.0
    %1929 = vmatprep.subr.mxu0 0.0
    %1930 = vmatpush2.msra.mxu0 0.0
    %1931 = vmatprep.subr.mxu0 0.0
    %1932 = vmatpush2.msra.mxu0 0.0
    %1933 = vmatprep.subr.mxu0 0.0
    %1934 = vmatpush2.msra.mxu0 0.0
    %1935 = vmatprep.subr.mxu0 0.0
    %1936 = vmatpush2.msra.mxu0 0.0
    %1937 = vmatprep.subr.mxu0 0.0
    %1938 = vmatpush2.msra.mxu0 0.0
    %1939 = vmatprep.subr.mxu0 0.0
    %1940 = vmatpush2.msra.mxu0 0.0
    %1941 = vmatprep.subr.mxu0 0.0
    %1942 = vmatpush2.msra.mxu0 0.0
    %1943 = vmatprep.subr.mxu0 0.0
    %1944 = vmatpush2.msra.mxu0 0.0
    %1945 = vmatprep.subr.mxu0 0.0
    %1946 = vmatpush2.msra.mxu0 0.0
    %1947 = vmatprep.mubr.f32.mxu0 0.0
    %1948 = vmatmul.mubr.f32.gmra.mxu0 %v1878
    %v1949 = vpop.f32.mrf.mxu0
    %v1950 = vadd.f32 0.0, %v1949
    %v1951 = vpop.f32.mrf.mxu0
    %1952 = vmatprep.mubr.f32.mxu0 0.0
    %1953 = vmatmul.mubr.f32.gmra.mxu0 %v1881
    %v1954 = vpop.f32.mrf.mxu0
    %v1955 = vadd.f32 0.0, %v1954
    %v1956 = vpop.f32.mrf.mxu0
    %1957 = vdwg.mxu0
    %v1958 = vadd.f32 %v1646, %v1950
    %v1959 = vadd.f32 %v1647, %v1955
    %1960 = vst.msk [vmem:[#allocation5] sm:$0xff] %vm50, %v1958
    %1961 = vst.msk [vmem:[#allocation5 + $0x8] sm:$0xff] %vm50, %v1959
    // Predicated region
    $region42: #{tpu_custom_call.1} parent=1 // pred_check
      _
    $region43: #{tpu_custom_call.1} parent=1 // pred_check_branch
      %1963 = sbr.rel (0) target = $region45
    $region44: #{tpu_custom_call.1} parent=1 // pred_region
      %s1965 = ssub.s32 256, 256
      %1966 = vsyncadd [#allocation4], %s1965
      %s1967 = sshll.u32 [#allocation5], 4
      %s1968 = int_to_ptr.vmem [resolvable:$true] %s1967
      %1973 = dma.vmem_to_hbm [thread:$0]  %s1968, 256, %s9, [#allocation4], 128, 128, 8
    $region45: #{tpu_custom_call.1} parent=1 // pred_fallthru
      _
    // Predicated region
    $region46: #{tpu_custom_call.1} parent=1 // pred_check
      _
    $region47: #{tpu_custom_call.1} parent=1 // pred_check_branch
      %1975 = sbr.rel (0) target = $region49
    $region48: #{tpu_custom_call.1} parent=1 // pred_region
      %1976 = dma.done [#allocation4], 256
    $region49: #{tpu_custom_call.1} parent=1 // pred_fallthru
      _
    %1977 = vsyncpa [#allocation3], 1
    %1978 = vsyncpa [#allocation4], 1

</llo_original>
